<compile_context>
chip_gen: v7x
topology: tpu7x:2x2x1
jax: 0.10.0
libtpu: 0.0.40
codegen_flags: <defaults>
</compile_context>

<pallas_src>
import functools

import jax
import jax.numpy as jnp
from jax.experimental import pallas as pl
from jax.experimental.pallas import tpu as pltpu

LEAKY_SLOPE = 0.01   # torch.nn.LeakyReLU / F.leaky_relu default negative_slope
BN_EPS = 1e-5        # torch.nn.BatchNorm1d default eps
GIN_EPS = 0.0        # PyG GINConv default eps (train_eps=False)


# ----------------------------------------------------------------------------
# Fused kernel: all GIN layers + BatchNorm + pooling + dense head
# ----------------------------------------------------------------------------
def _fused_gnn_kernel(a_ref, x0_ref, p_ref, w1_ref, b1_ref, w2_ref, b2_ref,
                      gamma_ref, beta_ref, wd_ref, bd_ref, out_ref,
                      xcur_ref, xpre_ref, ssum_ref, *, n_true, tm):
    l = pl.program_id(0)            # layer index (sequential carry)
    i = pl.program_id(1)            # node-row tile index within the layer
    n_layers = pl.num_programs(0)
    nt = pl.num_programs(1)

    # Load the (padded) input features into the resident activation slab once.
    @pl.when(jnp.logical_and(l == 0, i == 0))
    def _():
        xcur_ref[...] = x0_ref[...]

    # Reset the BatchNorm mean accumulator at the start of every layer.
    @pl.when(i == 0)
    def _():
        ssum_ref[...] = jnp.zeros_like(ssum_ref)

    # --- GIN aggregation for this row strip: A_tile @ x (self term folded into A) ---
    agg = jnp.dot(a_ref[...], xcur_ref[...],
                  preferred_element_type=jnp.float32)            # (tm, d) f32

    # --- GIN MLP: Linear -> LeakyReLU -> Linear (bf16 on MXU, f32 accumulate) ---
    h = jnp.dot(agg.astype(jnp.bfloat16), w1_ref[0],
                preferred_element_type=jnp.float32) + b1_ref[0]
    h = jnp.where(h >= 0.0, h, LEAKY_SLOPE * h)
    h = jnp.dot(h.astype(jnp.bfloat16), w2_ref[0],
                preferred_element_type=jnp.float32) + b2_ref[0]

    # Zero padded node rows so BN statistics / pooling only see real nodes.
    rows = jax.lax.broadcasted_iota(jnp.int32, (tm, 1), 0) + i * tm
    h = jnp.where(rows < n_true, h, 0.0)

    # Stash pre-BN activations and accumulate per-feature sums for the BN mean.
    start = pl.multiple_of(i * tm, tm)
    xpre_ref[pl.ds(start, tm), :] = h
    ssum_ref[...] += jnp.sum(h, axis=0, keepdims=True)

    # --- layer finalize: BatchNorm over all nodes (+ LeakyReLU / pooling + head) ---
    # TODO(synk): BatchNorm running-mean/var buffer updates (module state mutation)
    # are not reproduced; only training-mode batch-statistics normalization is.
    @pl.when(i == nt - 1)
    def _():
        inv_n = 1.0 / n_true
        mean = ssum_ref[...] * inv_n                              # (1, d)
        hall = xpre_ref[...]                                      # (n_pad, d)
        rows_all = jax.lax.broadcasted_iota(jnp.int32, (hall.shape[0], 1), 0)
        valid = rows_all < n_true
        diff = jnp.where(valid, hall - mean, 0.0)
        var = jnp.sum(diff * diff, axis=0, keepdims=True) * inv_n  # biased variance
        hn = gamma_ref[0] * diff * jax.lax.rsqrt(var + BN_EPS) + beta_ref[0]

        # Hidden layers: trailing F.leaky_relu from BlackBoxGNN.forward, feed next layer.
        @pl.when(l < n_layers - 1)
        def _():
            act = jnp.where(hn >= 0.0, hn, LEAKY_SLOPE * hn)
            xcur_ref[...] = jnp.where(valid, act, 0.0).astype(jnp.bfloat16)

        # Last graph layer: fused global_add_pool + dense head.
        @pl.when(l == n_layers - 1)
        def _():
            hm = jnp.where(valid, hn, 0.0)
            pooled = jnp.dot(p_ref[...], hm, preferred_element_type=jnp.float32)
            out_ref[...] = jnp.dot(pooled, wd_ref[...],
                                   preferred_element_type=jnp.float32) + bd_ref[...]


# ----------------------------------------------------------------------------
# Wrapper: padding / packing + pallas_call glue
# ----------------------------------------------------------------------------
def _round_up(v, m):
    return ((v + m - 1) // m) * m


def _pad2(a, rows, cols, fill=0.0):
    out = jnp.full((rows, cols), fill, jnp.float32)
    return out.at[: a.shape[0], : a.shape[1]].set(a.astype(jnp.float32))


def black_box_gnn_forward(x, adjacency, pool_mat, layer_params, dense_params,
                          *, tm_max=512):
    """Mirrors BlackBoxGNN.forward(x, edge_index, batch)."""
    assert len(layer_params) >= 1
    n_true, in_feats = x.shape
    emb = layer_params[-1][2].shape[1]
    n_classes = dense_params[0].shape[1]
    g_true = pool_mat.shape[0]
    n_graph_layers = len(layer_params)

    # Lane-dense / sublane-aligned padded sizes.
    d = _round_up(max(in_feats, emb), 128)
    c_pad = _round_up(n_classes, 128)
    tm = min(tm_max, _round_up(n_true, 8))
    n_pad = _round_up(n_true, tm)
    nt = n_pad // tm
    g_pad = _round_up(g_true, 8)

    # Pack / pad operands. Zero padding keeps the math exact; padded node rows are
    # additionally masked in-kernel so BatchNorm statistics use only real nodes.
    a_p = _pad2(adjacency, n_pad, n_pad).astype(jnp.bfloat16)     # edge counts + diag
    x_p = _pad2(x, n_pad, d).astype(jnp.bfloat16)
    p_p = _pad2(pool_mat, g_pad, n_pad)

    w1s = jnp.stack([_pad2(p[0], d, d) for p in layer_params]).astype(jnp.bfloat16)
    b1s = jnp.stack([_pad2(p[1], 1, d) for p in layer_params])
    w2s = jnp.stack([_pad2(p[2], d, d) for p in layer_params]).astype(jnp.bfloat16)
    b2s = jnp.stack([_pad2(p[3], 1, d) for p in layer_params])
    gms = jnp.stack([_pad2(p[4], 1, d, fill=1.0) for p in layer_params])
    bts = jnp.stack([_pad2(p[5], 1, d) for p in layer_params])
    wd_p = _pad2(dense_params[0], d, c_pad)
    bd_p = _pad2(dense_params[1], 1, c_pad)

    kernel = functools.partial(_fused_gnn_kernel, n_true=n_true, tm=tm)

    def layer_spec(shape):
        return pl.BlockSpec(shape, lambda l, i: (l, 0, 0))        # streamed per layer

    def resident2(shape):
        return pl.BlockSpec(shape, lambda l, i: (0, 0))           # DMA'd once, resident

    grid_spec = pltpu.PrefetchScalarGridSpec(
        num_scalar_prefetch=0,
        grid=(n_graph_layers, nt),
        in_specs=[
            pl.BlockSpec((tm, n_pad), lambda l, i: (i, 0)),       # adjacency row strip
            resident2((n_pad, d)),                                # input node features
            resident2((g_pad, n_pad)),                            # pool matrix
            layer_spec((1, d, d)),                                # W1[l]
            layer_spec((1, 1, d)),                                # b1[l]
            layer_spec((1, d, d)),                                # W2[l]
            layer_spec((1, 1, d)),                                # b2[l]
            layer_spec((1, 1, d)),                                # BN gamma[l]
            layer_spec((1, 1, d)),                                # BN beta[l]
            resident2((d, c_pad)),                                # dense head W
            resident2((1, c_pad)),                                # dense head b
        ],
        out_specs=pl.BlockSpec((g_pad, c_pad), lambda l, i: (0, 0)),
        scratch_shapes=[
            pltpu.VMEM((n_pad, d), jnp.bfloat16),   # current activations (layer input)
            pltpu.VMEM((n_pad, d), jnp.float32),    # pre-BN activations of this layer
            pltpu.VMEM((1, d), jnp.float32),        # per-feature sum for BN mean
        ],
    )

    out = pl.pallas_call(
        kernel,
        out_shape=jax.ShapeDtypeStruct((g_pad, c_pad), jnp.float32),
        grid_spec=grid_spec,
        compiler_params=pltpu.CompilerParams(
            dimension_semantics=("arbitrary", "arbitrary"),
            vmem_limit_bytes=32 * 1024 * 1024),
    )(a_p, x_p, p_p, w1s, b1s, w2s, b2s, gms, bts, wd_p, bd_p)

    return jnp.squeeze(out[:g_true, :n_classes])


# ----------------------------------------------------------------------------
# Deterministic parameter init (shapes as in BlackBoxGNN.__init__)
# ----------------------------------------------------------------------------
def init_params(key, in_features, emb_size, n_classes, n_layers):
    layer_params = []
    in_size = in_features
    for _ in range(n_layers - 1):
        key, k1, k2 = jax.random.split(key, 3)
        w1 = jax.random.normal(k1, (in_size, emb_size), jnp.float32) / jnp.sqrt(
            jnp.float32(in_size))
        b1 = jnp.zeros((1, emb_size), jnp.float32)
        w2 = jax.random.normal(k2, (emb_size, emb_size), jnp.float32) / jnp.sqrt(
            jnp.float32(emb_size))
        b2 = jnp.zeros((1, emb_size), jnp.float32)
        gamma = jnp.ones((1, emb_size), jnp.float32)   # BatchNorm weight
        beta = jnp.zeros((1, emb_size), jnp.float32)   # BatchNorm bias
        layer_params.append((w1, b1, w2, b2, gamma, beta))
        in_size = emb_size
    key, kd = jax.random.split(key)
    wd = jax.random.normal(kd, (emb_size, n_classes), jnp.float32) / jnp.sqrt(
        jnp.float32(emb_size))
    bd = jnp.zeros((1, n_classes), jnp.float32)
    return layer_params, (wd, bd)


# ----------------------------------------------------------------------------
# Graph construction helpers (glue, plain JAX)
# ----------------------------------------------------------------------------
def edge_index_to_adjacency(edge_index, num_nodes, self_weight=1.0 + GIN_EPS):
    """Dense adjacency with the GIN self term folded into the diagonal."""
    src, dst = edge_index[0], edge_index[1]
    a = jnp.zeros((num_nodes, num_nodes), jnp.float32)
    a = a.at[dst, src].add(1.0)    # messages flow src -> dst, summed at dst
    return a + self_weight * jnp.eye(num_nodes, dtype=jnp.float32)


def batch_to_pool_matrix(batch, num_graphs):
    return (batch[None, :] == jnp.arange(num_graphs)[:, None]).astype(jnp.float32)


# ----------------------------------------------------------------------------
# Main
# ----------------------------------------------------------------------------
if __name__ == "__main__":
    key = jax.random.PRNGKey(0)

    # Small, forward-consistent shapes.
    N = 16            # total nodes
    IN_FEATURES = 16  # node feature dim
    EMB_SIZE = 32
    N_CLASSES = 4
    N_LAYERS = 3      # -> 2 GIN graph layers (BlackBoxGNN builds n_layers - 1)
    N_GRAPHS = 2      # two graphs of 8 nodes each

    key, kx = jax.random.split(key)
    x = jax.random.normal(kx, (N, IN_FEATURES), jnp.float32)

    # Two ring graphs (8 nodes each), edges in both directions: edge_index [2, 32].
    src_list, dst_list = [], []
    for g in range(N_GRAPHS):
        base = g * 8
        for n in range(8):
            a, b = base + n, base + (n + 1) % 8
            src_list += [a, b]
            dst_list += [b, a]
    edge_index = jnp.array([src_list, dst_list], dtype=jnp.int32)
    batch = jnp.repeat(jnp.arange(N_GRAPHS, dtype=jnp.int32), 8)

    adjacency = edge_index_to_adjacency(edge_index, N)
    pool_mat = batch_to_pool_matrix(batch, N_GRAPHS)

    layer_params, dense_params = init_params(
        key, IN_FEATURES, EMB_SIZE, N_CLASSES, N_LAYERS)

    out = black_box_gnn_forward(x, adjacency, pool_mat, layer_params, dense_params)
    out = jax.block_until_ready(out)
    assert out.shape == (N_GRAPHS, N_CLASSES)
    assert bool(jnp.all(jnp.isfinite(out)))
    print("KERNEL_OK")
</pallas_src>

<mosaic_0001>
module attributes {stable_mosaic.version = 11 : i64} {
  func.func @_fused_gnn_kernel(%arg0: i32, %arg1: i32, %arg2: memref<16x16xbf16, #tpu.memory_space<vmem>>, %arg3: memref<16x128xbf16, #tpu.memory_space<vmem>>, %arg4: memref<8x16xf32, #tpu.memory_space<vmem>>, %arg5: memref<1x128x128xbf16, #tpu.memory_space<vmem>>, %arg6: memref<1x1x128xf32, #tpu.memory_space<vmem>>, %arg7: memref<1x128x128xbf16, #tpu.memory_space<vmem>>, %arg8: memref<1x1x128xf32, #tpu.memory_space<vmem>>, %arg9: memref<1x1x128xf32, #tpu.memory_space<vmem>>, %arg10: memref<1x1x128xf32, #tpu.memory_space<vmem>>, %arg11: memref<128x128xf32, #tpu.memory_space<vmem>>, %arg12: memref<1x128xf32, #tpu.memory_space<vmem>>, %arg13: memref<8x128xf32, #tpu.memory_space<vmem>>, %arg14: memref<16x128xbf16, #tpu.memory_space<vmem>>, %arg15: memref<16x128xf32, #tpu.memory_space<vmem>>, %arg16: memref<1x128xf32, #tpu.memory_space<vmem>>) attributes {dimension_semantics = [#tpu.dimension_semantics<arbitrary>, #tpu.dimension_semantics<arbitrary>], iteration_bounds = array<i64: 2, 1>, scalar_prefetch = 0 : i64, scratch_operands = 3 : i64, tpu.core_type = #tpu.core_type<tc>, window_params = [{transform_indices = @transform_0, window_bounds = array<i64: 16, 16>}, {pipeline_mode = #tpu.pipeline_mode<synchronous>, transform_indices = @transform_1, window_bounds = array<i64: 16, 128>}, {pipeline_mode = #tpu.pipeline_mode<synchronous>, transform_indices = @transform_2, window_bounds = array<i64: 8, 16>}, {transform_indices = @transform_3, window_bounds = array<i64: 1, 128, 128>}, {transform_indices = @transform_4, window_bounds = array<i64: 1, 1, 128>}, {transform_indices = @transform_5, window_bounds = array<i64: 1, 128, 128>}, {transform_indices = @transform_6, window_bounds = array<i64: 1, 1, 128>}, {transform_indices = @transform_7, window_bounds = array<i64: 1, 1, 128>}, {transform_indices = @transform_8, window_bounds = array<i64: 1, 1, 128>}, {pipeline_mode = #tpu.pipeline_mode<synchronous>, transform_indices = @transform_9, window_bounds = array<i64: 128, 128>}, {pipeline_mode = #tpu.pipeline_mode<synchronous>, transform_indices = @transform_10, window_bounds = array<i64: 1, 128>}, {pipeline_mode = #tpu.pipeline_mode<synchronous>, transform_indices = @transform_11, window_bounds = array<i64: 8, 128>}]} {
    %c0_i32 = arith.constant 0 : i32
    %0 = arith.cmpi eq, %arg0, %c0_i32 : i32
    %c0_i32_0 = arith.constant 0 : i32
    %1 = arith.cmpi eq, %arg1, %c0_i32_0 : i32
    %2 = arith.andi %0, %1 : i1
    %3 = arith.extui %2 : i1 to i32
    %c0_i32_1 = arith.constant 0 : i32
    %4 = arith.cmpi ne, %3, %c0_i32_1 : i32
    scf.if %4 {
      %c0_34 = arith.constant 0 : index
      %c0_35 = arith.constant 0 : index
      %54 = vector.load %arg3[%c0_34, %c0_35] : memref<16x128xbf16, #tpu.memory_space<vmem>>, vector<16x128xbf16>
      %c0_36 = arith.constant 0 : index
      %c0_37 = arith.constant 0 : index
      %55 = vector.load %arg14[%c0_36, %c0_37] : memref<16x128xbf16, #tpu.memory_space<vmem>>, vector<16x128xbf16>
      tpu.vector_store %arg14[%c0_36, %c0_37], %54 {strides = array<i32>} : memref<16x128xbf16, #tpu.memory_space<vmem>>, vector<16x128xbf16>,
    } else {
    }
    %c0_i32_2 = arith.constant 0 : i32
    %5 = arith.cmpi eq, %arg1, %c0_i32_2 : i32
    %6 = arith.extui %5 : i1 to i32
    %c0_i32_3 = arith.constant 0 : i32
    %7 = arith.cmpi ne, %6, %c0_i32_3 : i32
    scf.if %7 {
      %cst_34 = arith.constant 0.000000e+00 : f32
      %54 = vector.broadcast %cst_34 : f32 to vector<1x128xf32>
      %c0_35 = arith.constant 0 : index
      %c0_36 = arith.constant 0 : index
      %55 = vector.load %arg16[%c0_35, %c0_36] : memref<1x128xf32, #tpu.memory_space<vmem>>, vector<1x128xf32>
      tpu.vector_store %arg16[%c0_35, %c0_36], %54 {strides = array<i32>} : memref<1x128xf32, #tpu.memory_space<vmem>>, vector<1x128xf32>,
    } else {
    }
    %c0 = arith.constant 0 : index
    %c0_4 = arith.constant 0 : index
    %8 = vector.load %arg2[%c0, %c0_4] : memref<16x16xbf16, #tpu.memory_space<vmem>>, vector<16x16xbf16>
    %c0_5 = arith.constant 0 : index
    %c0_6 = arith.constant 0 : index
    %9 = vector.load %arg14[%c0_5, %c0_6] : memref<16x128xbf16, #tpu.memory_space<vmem>>, vector<16x128xbf16>
    %cst = arith.constant dense<0.000000e+00> : vector<16x128xf32>
    %10 = tpu.matmul %8, %9, %cst {dimension_numbers = #tpu.dot_dimension_numbers<[1], [0], [0], [1], [0, 0, 1, 1], [], []>} : vector<16x16xbf16>, vector<16x128xbf16>, vector<16x128xf32> -> vector<16x128xf32>
    %11 = arith.truncf %10 : vector<16x128xf32> to vector<16x128xbf16>
    %c0_7 = arith.constant 0 : index
    %c0_8 = arith.constant 0 : index
    %c0_9 = arith.constant 0 : index
    %12 = vector.load %arg5[%c0_7, %c0_8, %c0_9] : memref<1x128x128xbf16, #tpu.memory_space<vmem>>, vector<1x128x128xbf16>
    %13 = vector.shape_cast %12 : vector<1x128x128xbf16> to vector<128x128xbf16>
    %cst_10 = arith.constant dense<0.000000e+00> : vector<16x128xf32>
    %14 = tpu.matmul %11, %13, %cst_10 {dimension_numbers = #tpu.dot_dimension_numbers<[1], [0], [0], [1], [0, 0, 1, 1], [], []>} : vector<16x128xbf16>, vector<128x128xbf16>, vector<16x128xf32> -> vector<16x128xf32>
    %c0_11 = arith.constant 0 : index
    %c0_12 = arith.constant 0 : index
    %c0_13 = arith.constant 0 : index
    %15 = vector.load %arg6[%c0_11, %c0_12, %c0_13] : memref<1x1x128xf32, #tpu.memory_space<vmem>>, vector<1x1x128xf32>
    %16 = vector.shape_cast %15 : vector<1x1x128xf32> to vector<1x128xf32>
    %17 = vector.broadcast %16 : vector<1x128xf32> to vector<16x128xf32>
    %18 = arith.addf %14, %17 : vector<16x128xf32>
    %cst_14 = arith.constant 0.000000e+00 : f32
    %19 = vector.broadcast %cst_14 : f32 to vector<16x128xf32>
    %20 = arith.cmpf oge, %18, %19 : vector<16x128xf32>
    %cst_15 = arith.constant 0.00999999977 : f32
    %21 = vector.broadcast %cst_15 : f32 to vector<16x128xf32>
    %22 = arith.mulf %21, %18 : vector<16x128xf32>
    %23 = arith.select %20, %18, %22 : vector<16x128xi1>, vector<16x128xf32>
    %24 = arith.truncf %23 : vector<16x128xf32> to vector<16x128xbf16>
    %c0_16 = arith.constant 0 : index
    %c0_17 = arith.constant 0 : index
    %c0_18 = arith.constant 0 : index
    %25 = vector.load %arg7[%c0_16, %c0_17, %c0_18] : memref<1x128x128xbf16, #tpu.memory_space<vmem>>, vector<1x128x128xbf16>
    %26 = vector.shape_cast %25 : vector<1x128x128xbf16> to vector<128x128xbf16>
    %cst_19 = arith.constant dense<0.000000e+00> : vector<16x128xf32>
    %27 = tpu.matmul %24, %26, %cst_19 {dimension_numbers = #tpu.dot_dimension_numbers<[1], [0], [0], [1], [0, 0, 1, 1], [], []>} : vector<16x128xbf16>, vector<128x128xbf16>, vector<16x128xf32> -> vector<16x128xf32>
    %c0_20 = arith.constant 0 : index
    %c0_21 = arith.constant 0 : index
    %c0_22 = arith.constant 0 : index
    %28 = vector.load %arg8[%c0_20, %c0_21, %c0_22] : memref<1x1x128xf32, #tpu.memory_space<vmem>>, vector<1x1x128xf32>
    %29 = vector.shape_cast %28 : vector<1x1x128xf32> to vector<1x128xf32>
    %30 = vector.broadcast %29 : vector<1x128xf32> to vector<16x128xf32>
    %31 = arith.addf %27, %30 : vector<16x128xf32>
    %32 = tpu.iota {dimensions = array<i32: 0>} : vector<16x1xi32>
    %c16_i32 = arith.constant 16 : i32
    %33 = arith.muli %arg1, %c16_i32 : i32
    %34 = vector.broadcast %33 : i32 to vector<16x1xi32>
    %35 = arith.addi %32, %34 : vector<16x1xi32>
    %c16_i32_23 = arith.constant 16 : i32
    %36 = vector.broadcast %c16_i32_23 : i32 to vector<16x1xi32>
    %37 = arith.cmpi slt, %35, %36 : vector<16x1xi32>
    %cst_24 = arith.constant 0.000000e+00 : f32
    %38 = vector.shape_cast %37 : vector<16x1xi1> to vector<16x1xi1>
    %39 = vector.broadcast %38 : vector<16x1xi1> to vector<16x128xi1>
    %40 = vector.broadcast %cst_24 : f32 to vector<16x128xf32>
    %41 = arith.select %39, %31, %40 : vector<16x128xi1>, vector<16x128xf32>
    %c16_i32_25 = arith.constant 16 : i32
    %42 = arith.muli %arg1, %c16_i32_25 : i32
    %43 = tpu.assume_multiple %42, 16 : i32
    %44 = arith.index_cast %43 : i32 to index
    %c0_26 = arith.constant 0 : index
    %45 = vector.load %arg15[%44, %c0_26] : memref<16x128xf32, #tpu.memory_space<vmem>>, vector<16x128xf32>
    tpu.vector_store %arg15[%44, %c0_26], %41 {strides = array<i32>} : memref<16x128xf32, #tpu.memory_space<vmem>>, vector<16x128xf32>,
    %c0_27 = arith.constant 0 : index
    %c0_28 = arith.constant 0 : index
    %46 = vector.load %arg16[%c0_27, %c0_28] : memref<1x128xf32, #tpu.memory_space<vmem>>, vector<1x128xf32>
    %cst_29 = arith.constant dense<0.000000e+00> : vector<128xf32>
    %47 = vector.multi_reduction <add>, %41, %cst_29 [0] : vector<16x128xf32> to vector<128xf32>
    %48 = vector.shape_cast %47 : vector<128xf32> to vector<1x128xf32>
    %49 = arith.addf %46, %48 : vector<1x128xf32>
    %c0_30 = arith.constant 0 : index
    %c0_31 = arith.constant 0 : index
    %50 = vector.load %arg16[%c0_30, %c0_31] : memref<1x128xf32, #tpu.memory_space<vmem>>, vector<1x128xf32>
    tpu.vector_store %arg16[%c0_30, %c0_31], %49 {strides = array<i32>} : memref<1x128xf32, #tpu.memory_space<vmem>>, vector<1x128xf32>,
    %c0_i32_32 = arith.constant 0 : i32
    %51 = arith.cmpi eq, %arg1, %c0_i32_32 : i32
    %52 = arith.extui %51 : i1 to i32
    %c0_i32_33 = arith.constant 0 : i32
    %53 = arith.cmpi ne, %52, %c0_i32_33 : i32
    scf.if %53 {
      %c0_34 = arith.constant 0 : index
      %c0_35 = arith.constant 0 : index
      %54 = vector.load %arg16[%c0_34, %c0_35] : memref<1x128xf32, #tpu.memory_space<vmem>>, vector<1x128xf32>
      %cst_36 = arith.constant 6.250000e-02 : f32
      %55 = vector.broadcast %cst_36 : f32 to vector<1x128xf32>
      %56 = arith.mulf %54, %55 : vector<1x128xf32>
      %c0_37 = arith.constant 0 : index
      %c0_38 = arith.constant 0 : index
      %57 = vector.load %arg15[%c0_37, %c0_38] : memref<16x128xf32, #tpu.memory_space<vmem>>, vector<16x128xf32>
      %58 = tpu.iota {dimensions = array<i32: 0>} : vector<16x1xi32>
      %c16_i32_39 = arith.constant 16 : i32
      %59 = vector.broadcast %c16_i32_39 : i32 to vector<16x1xi32>
      %60 = arith.cmpi slt, %58, %59 : vector<16x1xi32>
      %61 = vector.broadcast %56 : vector<1x128xf32> to vector<16x128xf32>
      %62 = arith.subf %57, %61 : vector<16x128xf32>
      %cst_40 = arith.constant 0.000000e+00 : f32
      %63 = vector.shape_cast %60 : vector<16x1xi1> to vector<16x1xi1>
      %64 = vector.broadcast %63 : vector<16x1xi1> to vector<16x128xi1>
      %65 = vector.broadcast %cst_40 : f32 to vector<16x128xf32>
      %66 = arith.select %64, %62, %65 : vector<16x128xi1>, vector<16x128xf32>
      %67 = arith.mulf %66, %66 : vector<16x128xf32>
      %cst_41 = arith.constant dense<0.000000e+00> : vector<128xf32>
      %68 = vector.multi_reduction <add>, %67, %cst_41 [0] : vector<16x128xf32> to vector<128xf32>
      %69 = vector.shape_cast %68 : vector<128xf32> to vector<1x128xf32>
      %cst_42 = arith.constant 6.250000e-02 : f32
      %70 = vector.broadcast %cst_42 : f32 to vector<1x128xf32>
      %71 = arith.mulf %69, %70 : vector<1x128xf32>
      %c0_43 = arith.constant 0 : index
      %c0_44 = arith.constant 0 : index
      %c0_45 = arith.constant 0 : index
      %72 = vector.load %arg9[%c0_43, %c0_44, %c0_45] : memref<1x1x128xf32, #tpu.memory_space<vmem>>, vector<1x1x128xf32>
      %73 = vector.shape_cast %72 : vector<1x1x128xf32> to vector<1x128xf32>
      %74 = vector.broadcast %73 : vector<1x128xf32> to vector<16x128xf32>
      %75 = arith.mulf %74, %66 : vector<16x128xf32>
      %cst_46 = arith.constant 9.99999974E-6 : f32
      %76 = vector.broadcast %cst_46 : f32 to vector<1x128xf32>
      %77 = arith.addf %71, %76 : vector<1x128xf32>
      %78 = math.rsqrt %77 : vector<1x128xf32>
      %79 = vector.broadcast %78 : vector<1x128xf32> to vector<16x128xf32>
      %80 = arith.mulf %75, %79 : vector<16x128xf32>
      %c0_47 = arith.constant 0 : index
      %c0_48 = arith.constant 0 : index
      %c0_49 = arith.constant 0 : index
      %81 = vector.load %arg10[%c0_47, %c0_48, %c0_49] : memref<1x1x128xf32, #tpu.memory_space<vmem>>, vector<1x1x128xf32>
      %82 = vector.shape_cast %81 : vector<1x1x128xf32> to vector<1x128xf32>
      %83 = vector.broadcast %82 : vector<1x128xf32> to vector<16x128xf32>
      %84 = arith.addf %80, %83 : vector<16x128xf32>
      %c1_i32 = arith.constant 1 : i32
      %85 = arith.cmpi slt, %arg0, %c1_i32 : i32
      %86 = arith.extui %85 : i1 to i32
      %c0_i32_50 = arith.constant 0 : i32
      %87 = arith.cmpi ne, %86, %c0_i32_50 : i32
      scf.if %87 {
        %cst_53 = arith.constant 0.000000e+00 : f32
        %91 = vector.broadcast %cst_53 : f32 to vector<16x128xf32>
        %92 = arith.cmpf oge, %84, %91 : vector<16x128xf32>
        %cst_54 = arith.constant 0.00999999977 : f32
        %93 = vector.broadcast %cst_54 : f32 to vector<16x128xf32>
        %94 = arith.mulf %93, %84 : vector<16x128xf32>
        %95 = arith.select %92, %84, %94 : vector<16x128xi1>, vector<16x128xf32>
        %cst_55 = arith.constant 0.000000e+00 : f32
        %96 = vector.shape_cast %60 : vector<16x1xi1> to vector<16x1xi1>
        %97 = vector.broadcast %96 : vector<16x1xi1> to vector<16x128xi1>
        %98 = vector.broadcast %cst_55 : f32 to vector<16x128xf32>
        %99 = arith.select %97, %95, %98 : vector<16x128xi1>, vector<16x128xf32>
        %100 = arith.truncf %99 : vector<16x128xf32> to vector<16x128xbf16>
        %c0_56 = arith.constant 0 : index
        %c0_57 = arith.constant 0 : index
        %101 = vector.load %arg14[%c0_56, %c0_57] : memref<16x128xbf16, #tpu.memory_space<vmem>>, vector<16x128xbf16>
        tpu.vector_store %arg14[%c0_56, %c0_57], %100 {strides = array<i32>} : memref<16x128xbf16, #tpu.memory_space<vmem>>, vector<16x128xbf16>,
      } else {
      }
      %c1_i32_51 = arith.constant 1 : i32
      %88 = arith.cmpi eq, %arg0, %c1_i32_51 : i32
      %89 = arith.extui %88 : i1 to i32
      %c0_i32_52 = arith.constant 0 : i32
      %90 = arith.cmpi ne, %89, %c0_i32_52 : i32
      scf.if %90 {
        %cst_53 = arith.constant 0.000000e+00 : f32
        %91 = vector.shape_cast %60 : vector<16x1xi1> to vector<16x1xi1>
        %92 = vector.broadcast %91 : vector<16x1xi1> to vector<16x128xi1>
        %93 = vector.broadcast %cst_53 : f32 to vector<16x128xf32>
        %94 = arith.select %92, %84, %93 : vector<16x128xi1>, vector<16x128xf32>
        %c0_54 = arith.constant 0 : index
        %c0_55 = arith.constant 0 : index
        %95 = vector.load %arg4[%c0_54, %c0_55] : memref<8x16xf32, #tpu.memory_space<vmem>>, vector<8x16xf32>
        %cst_56 = arith.constant dense<0.000000e+00> : vector<8x128xf32>
        %96 = tpu.matmul %95, %94, %cst_56 {dimension_numbers = #tpu.dot_dimension_numbers<[1], [0], [0], [1], [0, 0, 1, 1], [], []>} : vector<8x16xf32>, vector<16x128xf32>, vector<8x128xf32> -> vector<8x128xf32>
        %c0_57 = arith.constant 0 : index
        %c0_58 = arith.constant 0 : index
        %97 = vector.load %arg11[%c0_57, %c0_58] : memref<128x128xf32, #tpu.memory_space<vmem>>, vector<128x128xf32>
        %cst_59 = arith.constant dense<0.000000e+00> : vector<8x128xf32>
        %98 = tpu.matmul %96, %97, %cst_59 {dimension_numbers = #tpu.dot_dimension_numbers<[1], [0], [0], [1], [0, 0, 1, 1], [], []>} : vector<8x128xf32>, vector<128x128xf32>, vector<8x128xf32> -> vector<8x128xf32>
        %c0_60 = arith.constant 0 : index
        %c0_61 = arith.constant 0 : index
        %99 = vector.load %arg12[%c0_60, %c0_61] : memref<1x128xf32, #tpu.memory_space<vmem>>, vector<1x128xf32>
        %100 = vector.broadcast %99 : vector<1x128xf32> to vector<8x128xf32>
        %101 = arith.addf %98, %100 : vector<8x128xf32>
        %c0_62 = arith.constant 0 : index
        %c0_63 = arith.constant 0 : index
        %102 = vector.load %arg13[%c0_62, %c0_63] : memref<8x128xf32, #tpu.memory_space<vmem>>, vector<8x128xf32>
        tpu.vector_store %arg13[%c0_62, %c0_63], %101 {strides = array<i32>} : memref<8x128xf32, #tpu.memory_space<vmem>>, vector<8x128xf32>,
      } else {
      }
    } else {
    }
    return
  }
  func.func @transform_0(%arg0: i32, %arg1: i32) -> (i32, i32) {
    %c0_i32 = arith.constant 0 : i32
    %c0_i32_0 = arith.constant 0 : i32
    return %arg1, %c0_i32 : i32, i32
  }
  func.func @transform_1(%arg0: i32, %arg1: i32) -> (i32, i32) {
    %c0_i32 = arith.constant 0 : i32
    %c0_i32_0 = arith.constant 0 : i32
    %c0_i32_1 = arith.constant 0 : i32
    return %c0_i32, %c0_i32_0 : i32, i32
  }
  func.func @transform_2(%arg0: i32, %arg1: i32) -> (i32, i32) {
    %c0_i32 = arith.constant 0 : i32
    %c0_i32_0 = arith.constant 0 : i32
    %c0_i32_1 = arith.constant 0 : i32
    return %c0_i32, %c0_i32_0 : i32, i32
  }
  func.func @transform_3(%arg0: i32, %arg1: i32) -> (i32, i32, i32) {
    %c0_i32 = arith.constant 0 : i32
    %c0_i32_0 = arith.constant 0 : i32
    %c0_i32_1 = arith.constant 0 : i32
    return %arg0, %c0_i32, %c0_i32_0 : i32, i32, i32
  }
  func.func @transform_4(%arg0: i32, %arg1: i32) -> (i32, i32, i32) {
    %c0_i32 = arith.constant 0 : i32
    %c0_i32_0 = arith.constant 0 : i32
    %c0_i32_1 = arith.constant 0 : i32
    return %arg0, %c0_i32, %c0_i32_0 : i32, i32, i32
  }
  func.func @transform_5(%arg0: i32, %arg1: i32) -> (i32, i32, i32) {
    %c0_i32 = arith.constant 0 : i32
    %c0_i32_0 = arith.constant 0 : i32
    %c0_i32_1 = arith.constant 0 : i32
    return %arg0, %c0_i32, %c0_i32_0 : i32, i32, i32
  }
  func.func @transform_6(%arg0: i32, %arg1: i32) -> (i32, i32, i32) {
    %c0_i32 = arith.constant 0 : i32
    %c0_i32_0 = arith.constant 0 : i32
    %c0_i32_1 = arith.constant 0 : i32
    return %arg0, %c0_i32, %c0_i32_0 : i32, i32, i32
  }
  func.func @transform_7(%arg0: i32, %arg1: i32) -> (i32, i32, i32) {
    %c0_i32 = arith.constant 0 : i32
    %c0_i32_0 = arith.constant 0 : i32
    %c0_i32_1 = arith.constant 0 : i32
    return %arg0, %c0_i32, %c0_i32_0 : i32, i32, i32
  }
  func.func @transform_8(%arg0: i32, %arg1: i32) -> (i32, i32, i32) {
    %c0_i32 = arith.constant 0 : i32
    %c0_i32_0 = arith.constant 0 : i32
    %c0_i32_1 = arith.constant 0 : i32
    return %arg0, %c0_i32, %c0_i32_0 : i32, i32, i32
  }
  func.func @transform_9(%arg0: i32, %arg1: i32) -> (i32, i32) {
    %c0_i32 = arith.constant 0 : i32
    %c0_i32_0 = arith.constant 0 : i32
    %c0_i32_1 = arith.constant 0 : i32
    return %c0_i32, %c0_i32_0 : i32, i32
  }
  func.func @transform_10(%arg0: i32, %arg1: i32) -> (i32, i32) {
    %c0_i32 = arith.constant 0 : i32
    %c0_i32_0 = arith.constant 0 : i32
    %c0_i32_1 = arith.constant 0 : i32
    return %c0_i32, %c0_i32_0 : i32, i32
  }
  func.func @transform_11(%arg0: i32, %arg1: i32) -> (i32, i32) {
    %c0_i32 = arith.constant 0 : i32
    %c0_i32_0 = arith.constant 0 : i32
    %c0_i32_1 = arith.constant 0 : i32
    return %c0_i32, %c0_i32_0 : i32, i32
  }
}

</mosaic_0001>

<llo_original>
// kernel: tpu_custom_call.1
$region0: #{tpu_custom_call.1}
  #allocation0 [shape = 'u32[]', space=smem, size = 0x4, offset = 0x4, fixed_abs, tag = 'smem constant byte address 0x4 - core index']
  #allocation1 [shape = 'u32[144,128]{1,0:T(1,128)}', space=vmem, size = 0x12000, scoped, tag = 'internal scratch']
  #allocation2 [shape = 'bf16[16,128]{1,0:T(16,128)(2,1)}', space=vmem, size = 0x1000, scoped, tag = 'scratch operand']
  #allocation3 [shape = 'f32[16,128]{1,0:T(8,128)}', space=vmem, size = 0x2000, scoped, tag = 'scratch operand']
  #allocation4 [shape = 'f32[1,128]{1,0:T(1,128)}', space=vmem, size = 0x200, scoped, tag = 'scratch operand']
  %s0 = inlined_call_operand.hbm [shape: bf16[16,16], index: 0, kind: input, shape index: {}]
  %s1 = inlined_call_operand.hbm [shape: bf16[16,128], index: 1, kind: input, shape index: {}]
  %s2 = inlined_call_operand.hbm [shape: f32[8,16], index: 2, kind: input, shape index: {}]
  %s3 = inlined_call_operand.hbm [shape: bf16[2,128,128], index: 3, kind: input, shape index: {}]
  %s4 = inlined_call_operand.vmem [shape: f32[2,1,128], index: 4, kind: input, shape index: {}]
  %s5 = inlined_call_operand.hbm [shape: bf16[2,128,128], index: 5, kind: input, shape index: {}]
  %s6 = inlined_call_operand.vmem [shape: f32[2,1,128], index: 6, kind: input, shape index: {}]
  %s7 = inlined_call_operand.vmem [shape: f32[2,1,128], index: 7, kind: input, shape index: {}]
  %s8 = inlined_call_operand.vmem [shape: f32[2,1,128], index: 8, kind: input, shape index: {}]
  %s9 = inlined_call_operand.hbm [shape: f32[128,128], index: 9, kind: input, shape index: {}]
  %s10 = inlined_call_operand.vmem [shape: f32[1,128], index: 10, kind: input, shape index: {}]
  %s11 = inlined_call_operand.hbm [shape: f32[8,128], index: 11, kind: output, shape index: {}]
  %s12 = sld [smem:[#allocation0]]
  $region121: #{tpu_custom_call.1} parent=0
    _
  %s14 = ssub.s32 1, %s12
  %s15 = scalar_select 0, %s14, %s12
  $region1: #{tpu_custom_call.1} parent=0
    #allocation5 [shape = 'u8[4096]{0}', space=vmem, size = 0x1000, scoped, tag = 'input window, operand 0, single buffered']
    #allocation6 [shape = 's32[2]{0}', space=sflag, size = 0x8, scoped, tag = 'scoped memory for tpu_custom_call.1']
    #allocation7 [shape = 's32[2]{0}', space=sflag, size = 0x8, scoped, tag = 'scoped memory for tpu_custom_call.1']
    #allocation8 [shape = 'u8[4096]{0}', space=vmem, size = 0x1000, scoped, tag = 'input window, operand 1, single buffered']
    #allocation9 [shape = 's32[1]{0}', space=sflag, size = 0x4, scoped, tag = 'scoped memory for tpu_custom_call.1']
    #allocation10 [shape = 'u8[4096]{0}', space=vmem, size = 0x1000, scoped, tag = 'input window, operand 2, single buffered']
    #allocation11 [shape = 'u8[65536]{0}', space=vmem, size = 0x10000, scoped, tag = 'input window, operand 3']
    #allocation12 [shape = 's32[2]{0}', space=sflag, size = 0x8, scoped, tag = 'scoped memory for tpu_custom_call.1']
    #allocation13 [shape = 'u8[65536]{0}', space=vmem, size = 0x10000, scoped, tag = 'input window, operand 5']
    #allocation14 [shape = 'u8[65536]{0}', space=vmem, size = 0x10000, scoped, tag = 'input window, operand 9, single buffered']
    #allocation15 [shape = 's32[1]{0}', space=sflag, size = 0x4, scoped, tag = 'scoped memory for tpu_custom_call.1']
    #allocation16 [shape = 'u8[4096]{0}', space=vmem, size = 0x1000, scoped, tag = 'output window, operand 0, single buffered']
    %16 = vsyncpa [#allocation6], 0
    %17 = vsyncpa [#allocation9], 0
    %18 = vsyncpa [#allocation12], 0
    %s19 = scalar_lea.sflag [#allocation12], 1
    %20 = vsyncpa %s19, 0
    %21 = vsyncpa [#allocation15], 0
    %22 = vsyncpa [#allocation7], 0
    loop: start=0, step=1, limit=4
    $region2: #{tpu_custom_call.1} parent=1 // loop_pre_header
      _
    $region3: #{tpu_custom_call.1} parent=1 // loop_header
      %s24 = sphi 0, %s28
      %p25 = scmp.ge.s32.totalorder %s24, 4
      %s31 = sphi 0, %s43
      %s32 = sphi 0, %s39
      %s33 = sphi 0, %s31
      %s34 = sphi 0, %s32
      %s35 = sphi 0, %s33
      %s36 = sphi 0, %s34
      %s46 = sphi 0, %s48
      %s49 = sphi 0, %s46
      %s50 = sphi 0, %s49
      %s66 = sphi 0, %s50
      %s70 = sphi 0, %s70
      %s72 = sphi 0, %s70
      %s73 = sphi 0, %s72
      %s87 = sphi 0, %s73
      %s91 = sphi 0, %s91
      %s93 = sphi 0, %s91
      %s94 = sphi 0, %s93
      %s108 = sphi 0, %s94
      %s114 = sphi 0, %s116
      %s117 = sphi 0, %s114
      %s118 = sphi 0, %s117
      %s134 = sphi 0, %s118
      %s140 = sphi 0, %s142
      %s143 = sphi 0, %s140
      %s144 = sphi 0, %s143
      %s160 = sphi 0, %s144
      %s166 = sphi 0, %s168
      %s169 = sphi 0, %s166
      %s170 = sphi 0, %s169
      %s186 = sphi 0, %s170
      %s192 = sphi 0, %s194
      %s195 = sphi 0, %s192
      %s196 = sphi 0, %s195
      %s212 = sphi 0, %s196
      %s218 = sphi 0, %s220
      %s221 = sphi 0, %s218
      %s222 = sphi 0, %s221
      %s238 = sphi 0, %s222
      %s244 = sphi 0, %s246
      %s247 = sphi 0, %s244
      %s248 = sphi 0, %s247
      %s264 = sphi 0, %s248
      %s268 = sphi 0, %s268
      %s270 = sphi 0, %s268
      %s271 = sphi 0, %s270
      %s285 = sphi 0, %s271
      %s289 = sphi 0, %s289
      %s291 = sphi 0, %s289
      %s292 = sphi 0, %s291
      %s306 = sphi 0, %s292
      %s310 = sphi 0, %s310
      %s312 = sphi 0, %s310
      %s313 = sphi 0, %s312
      %s327 = sphi 0, %s313
    $region4: #{tpu_custom_call.1} parent=1 // loop_header_branch
      %27 = sbr.rel (%p25) target = $region8
    $region5: #{tpu_custom_call.1} parent=1 // loop_body
      %s29 = ssub.s32 %s24, 1
      %s30 = ssub.s32 %s24, 2
      %s37 = sadd.s32 1, %s32
      %p38 = scmp.ge.s32.totalorder %s37, 1
      %s39 = scalar_select %p38, 0, %s37
      %s40 = sadd.s32 1, %s31
      %s41 = scalar_select %p38, %s40, %s31
      %p42 = scmp.ge.s32.totalorder %s41, 2
      %s43 = scalar_select %p42, 0, %s41
      %s44 = ssub.s32 %s32, %s39
      %p45 = scmp.eq.s32.totalorder %s44, 0
      %s47 = sadd.s32 %s46, 1
      %s48 = scalar_select %p45, %s46, %s47
      %p51 = pneg %p45
      %p52 = scmp.eq.s32.totalorder %s24, 1
      %p53 = por %p51, %p52
      %p54 = scmp.ne.s32.totalorder %s46, %s49
      %p55 = scmp.eq.s32.totalorder %s24, 0
      %p56 = por %p54, %p55
      %p57 = scmp.ne.s32.totalorder %s46, %s49
      %p58 = scmp.eq.s32.totalorder %s29, 1
      %p59 = por %p57, %p58
      %p60 = scmp.ne.s32.totalorder %s49, %s50
      %p61 = scmp.eq.s32.totalorder %s29, 0
      %p62 = por %p60, %p61
      %p63 = scmp.ne.s32.totalorder %s49, %s50
      %p64 = scmp.eq.s32.totalorder %s30, 1
      %p65 = por %p63, %p64
      %p67 = scmp.ne.s32.totalorder %s50, %s66
      %p68 = scmp.eq.s32.totalorder %s30, 0
      %p69 = por %p67, %p68
      %s71 = sadd.s32 %s70, 1
      %p74 = scmp.eq.s32.totalorder %s24, 1
      %p75 = scmp.ne.s32.totalorder %s70, %s72
      %p76 = scmp.eq.s32.totalorder %s24, 0
      %p77 = por %p75, %p76
      %p78 = scmp.ne.s32.totalorder %s70, %s72
      %p79 = scmp.eq.s32.totalorder %s29, 1
      %p80 = por %p78, %p79
      %p81 = scmp.ne.s32.totalorder %s72, %s73
      %p82 = scmp.eq.s32.totalorder %s29, 0
      %p83 = por %p81, %p82
      %p84 = scmp.ne.s32.totalorder %s72, %s73
      %p85 = scmp.eq.s32.totalorder %s30, 1
      %p86 = por %p84, %p85
      %p88 = scmp.ne.s32.totalorder %s73, %s87
      %p89 = scmp.eq.s32.totalorder %s30, 0
      %p90 = por %p88, %p89
      %s92 = sadd.s32 %s91, 1
      %p95 = scmp.eq.s32.totalorder %s24, 1
      %p96 = scmp.ne.s32.totalorder %s91, %s93
      %p97 = scmp.eq.s32.totalorder %s24, 0
      %p98 = por %p96, %p97
      %p99 = scmp.ne.s32.totalorder %s91, %s93
      %p100 = scmp.eq.s32.totalorder %s29, 1
      %p101 = por %p99, %p100
      %p102 = scmp.ne.s32.totalorder %s93, %s94
      %p103 = scmp.eq.s32.totalorder %s29, 0
      %p104 = por %p102, %p103
      %p105 = scmp.ne.s32.totalorder %s93, %s94
      %p106 = scmp.eq.s32.totalorder %s30, 1
      %p107 = por %p105, %p106
      %p109 = scmp.ne.s32.totalorder %s94, %s108
      %p110 = scmp.eq.s32.totalorder %s30, 0
      %p111 = por %p109, %p110
      %s112 = ssub.s32 %s31, %s43
      %p113 = scmp.eq.s32.totalorder %s112, 0
      %s115 = sadd.s32 %s114, 1
      %s116 = scalar_select %p113, %s114, %s115
      %p119 = pneg %p113
      %p120 = scmp.eq.s32.totalorder %s24, 1
      %p121 = por %p119, %p120
      %p122 = scmp.ne.s32.totalorder %s114, %s117
      %p123 = scmp.eq.s32.totalorder %s24, 0
      %p124 = por %p122, %p123
      %p125 = scmp.ne.s32.totalorder %s114, %s117
      %p126 = scmp.eq.s32.totalorder %s29, 1
      %p127 = por %p125, %p126
      %p128 = scmp.ne.s32.totalorder %s117, %s118
      %p129 = scmp.eq.s32.totalorder %s29, 0
      %p130 = por %p128, %p129
      %p131 = scmp.ne.s32.totalorder %s117, %s118
      %p132 = scmp.eq.s32.totalorder %s30, 1
      %p133 = por %p131, %p132
      %p135 = scmp.ne.s32.totalorder %s118, %s134
      %p136 = scmp.eq.s32.totalorder %s30, 0
      %p137 = por %p135, %p136
      %s138 = ssub.s32 %s31, %s43
      %p139 = scmp.eq.s32.totalorder %s138, 0
      %s141 = sadd.s32 %s140, 1
      %s142 = scalar_select %p139, %s140, %s141
      %p145 = pneg %p139
      %p146 = scmp.eq.s32.totalorder %s24, 1
      %p147 = por %p145, %p146
      %p148 = scmp.ne.s32.totalorder %s140, %s143
      %p149 = scmp.eq.s32.totalorder %s24, 0
      %p150 = por %p148, %p149
      %p151 = scmp.ne.s32.totalorder %s140, %s143
      %p152 = scmp.eq.s32.totalorder %s29, 1
      %p153 = por %p151, %p152
      %p154 = scmp.ne.s32.totalorder %s143, %s144
      %p155 = scmp.eq.s32.totalorder %s29, 0
      %p156 = por %p154, %p155
      %p157 = scmp.ne.s32.totalorder %s143, %s144
      %p158 = scmp.eq.s32.totalorder %s30, 1
      %p159 = por %p157, %p158
      %p161 = scmp.ne.s32.totalorder %s144, %s160
      %p162 = scmp.eq.s32.totalorder %s30, 0
      %p163 = por %p161, %p162
      %s164 = ssub.s32 %s31, %s43
      %p165 = scmp.eq.s32.totalorder %s164, 0
      %s167 = sadd.s32 %s166, 1
      %s168 = scalar_select %p165, %s166, %s167
      %p171 = pneg %p165
      %p172 = scmp.eq.s32.totalorder %s24, 1
      %p173 = por %p171, %p172
      %p174 = scmp.ne.s32.totalorder %s166, %s169
      %p175 = scmp.eq.s32.totalorder %s24, 0
      %p176 = por %p174, %p175
      %p177 = scmp.ne.s32.totalorder %s166, %s169
      %p178 = scmp.eq.s32.totalorder %s29, 1
      %p179 = por %p177, %p178
      %p180 = scmp.ne.s32.totalorder %s169, %s170
      %p181 = scmp.eq.s32.totalorder %s29, 0
      %p182 = por %p180, %p181
      %p183 = scmp.ne.s32.totalorder %s169, %s170
      %p184 = scmp.eq.s32.totalorder %s30, 1
      %p185 = por %p183, %p184
      %p187 = scmp.ne.s32.totalorder %s170, %s186
      %p188 = scmp.eq.s32.totalorder %s30, 0
      %p189 = por %p187, %p188
      %s190 = ssub.s32 %s31, %s43
      %p191 = scmp.eq.s32.totalorder %s190, 0
      %s193 = sadd.s32 %s192, 1
      %s194 = scalar_select %p191, %s192, %s193
      %p197 = pneg %p191
      %p198 = scmp.eq.s32.totalorder %s24, 1
      %p199 = por %p197, %p198
      %p200 = scmp.ne.s32.totalorder %s192, %s195
      %p201 = scmp.eq.s32.totalorder %s24, 0
      %p202 = por %p200, %p201
      %p203 = scmp.ne.s32.totalorder %s192, %s195
      %p204 = scmp.eq.s32.totalorder %s29, 1
      %p205 = por %p203, %p204
      %p206 = scmp.ne.s32.totalorder %s195, %s196
      %p207 = scmp.eq.s32.totalorder %s29, 0
      %p208 = por %p206, %p207
      %p209 = scmp.ne.s32.totalorder %s195, %s196
      %p210 = scmp.eq.s32.totalorder %s30, 1
      %p211 = por %p209, %p210
      %p213 = scmp.ne.s32.totalorder %s196, %s212
      %p214 = scmp.eq.s32.totalorder %s30, 0
      %p215 = por %p213, %p214
      %s216 = ssub.s32 %s31, %s43
      %p217 = scmp.eq.s32.totalorder %s216, 0
      %s219 = sadd.s32 %s218, 1
      %s220 = scalar_select %p217, %s218, %s219
      %p223 = pneg %p217
      %p224 = scmp.eq.s32.totalorder %s24, 1
      %p225 = por %p223, %p224
      %p226 = scmp.ne.s32.totalorder %s218, %s221
      %p227 = scmp.eq.s32.totalorder %s24, 0
      %p228 = por %p226, %p227
      %p229 = scmp.ne.s32.totalorder %s218, %s221
      %p230 = scmp.eq.s32.totalorder %s29, 1
      %p231 = por %p229, %p230
      %p232 = scmp.ne.s32.totalorder %s221, %s222
      %p233 = scmp.eq.s32.totalorder %s29, 0
      %p234 = por %p232, %p233
      %p235 = scmp.ne.s32.totalorder %s221, %s222
      %p236 = scmp.eq.s32.totalorder %s30, 1
      %p237 = por %p235, %p236
      %p239 = scmp.ne.s32.totalorder %s222, %s238
      %p240 = scmp.eq.s32.totalorder %s30, 0
      %p241 = por %p239, %p240
      %s242 = ssub.s32 %s31, %s43
      %p243 = scmp.eq.s32.totalorder %s242, 0
      %s245 = sadd.s32 %s244, 1
      %s246 = scalar_select %p243, %s244, %s245
      %p249 = pneg %p243
      %p250 = scmp.eq.s32.totalorder %s24, 1
      %p251 = por %p249, %p250
      %p252 = scmp.ne.s32.totalorder %s244, %s247
      %p253 = scmp.eq.s32.totalorder %s24, 0
      %p254 = por %p252, %p253
      %p255 = scmp.ne.s32.totalorder %s244, %s247
      %p256 = scmp.eq.s32.totalorder %s29, 1
      %p257 = por %p255, %p256
      %p258 = scmp.ne.s32.totalorder %s247, %s248
      %p259 = scmp.eq.s32.totalorder %s29, 0
      %p260 = por %p258, %p259
      %p261 = scmp.ne.s32.totalorder %s247, %s248
      %p262 = scmp.eq.s32.totalorder %s30, 1
      %p263 = por %p261, %p262
      %p265 = scmp.ne.s32.totalorder %s248, %s264
      %p266 = scmp.eq.s32.totalorder %s30, 0
      %p267 = por %p265, %p266
      %s269 = sadd.s32 %s268, 1
      %p272 = scmp.eq.s32.totalorder %s24, 1
      %p273 = scmp.ne.s32.totalorder %s268, %s270
      %p274 = scmp.eq.s32.totalorder %s24, 0
      %p275 = por %p273, %p274
      %p276 = scmp.ne.s32.totalorder %s268, %s270
      %p277 = scmp.eq.s32.totalorder %s29, 1
      %p278 = por %p276, %p277
      %p279 = scmp.ne.s32.totalorder %s270, %s271
      %p280 = scmp.eq.s32.totalorder %s29, 0
      %p281 = por %p279, %p280
      %p282 = scmp.ne.s32.totalorder %s270, %s271
      %p283 = scmp.eq.s32.totalorder %s30, 1
      %p284 = por %p282, %p283
      %p286 = scmp.ne.s32.totalorder %s271, %s285
      %p287 = scmp.eq.s32.totalorder %s30, 0
      %p288 = por %p286, %p287
      %s290 = sadd.s32 %s289, 1
      %p293 = scmp.eq.s32.totalorder %s24, 1
      %p294 = scmp.ne.s32.totalorder %s289, %s291
      %p295 = scmp.eq.s32.totalorder %s24, 0
      %p296 = por %p294, %p295
      %p297 = scmp.ne.s32.totalorder %s289, %s291
      %p298 = scmp.eq.s32.totalorder %s29, 1
      %p299 = por %p297, %p298
      %p300 = scmp.ne.s32.totalorder %s291, %s292
      %p301 = scmp.eq.s32.totalorder %s29, 0
      %p302 = por %p300, %p301
      %p303 = scmp.ne.s32.totalorder %s291, %s292
      %p304 = scmp.eq.s32.totalorder %s30, 1
      %p305 = por %p303, %p304
      %p307 = scmp.ne.s32.totalorder %s292, %s306
      %p308 = scmp.eq.s32.totalorder %s30, 0
      %p309 = por %p307, %p308
      %s311 = sadd.s32 %s310, 1
      %p314 = scmp.eq.s32.totalorder %s24, 1
      %p315 = scmp.ne.s32.totalorder %s310, %s312
      %p316 = scmp.eq.s32.totalorder %s24, 0
      %p317 = por %p315, %p316
      %p318 = scmp.ne.s32.totalorder %s310, %s312
      %p319 = scmp.eq.s32.totalorder %s29, 1
      %p320 = por %p318, %p319
      %p321 = scmp.ne.s32.totalorder %s312, %s313
      %p322 = scmp.eq.s32.totalorder %s29, 0
      %p323 = por %p321, %p322
      %p324 = scmp.ne.s32.totalorder %s312, %s313
      %p325 = scmp.eq.s32.totalorder %s30, 1
      %p326 = por %p324, %p325
      %p328 = scmp.ne.s32.totalorder %s313, %s327
      %p329 = scmp.eq.s32.totalorder %s30, 0
      %p330 = por %p328, %p329
      %p331 = scmp.le.s32.totalorder 1, %s24
      %p332 = scmp.lt.s32.totalorder %s24, 3
      %p333 = pnand %p331, %p332
      %p334 = pneg %p333
      // Predicated region
      $region9: #{tpu_custom_call.1} parent=5 // pred_check
        _
      $region10: #{tpu_custom_call.1} parent=5 // pred_check_branch
        %336 = sbr.rel (%p333) target = $region12
      $region11: #{tpu_custom_call.1} parent=5 // pred_region
        %s337 = ssub.s32 %s24, 1
        // Predicated region
        $region13: #{tpu_custom_call.1} parent=11 // pred_check
          %p338 = pneg %p62
        $region14: #{tpu_custom_call.1} parent=11 // pred_check_branch
          %340 = sbr.rel (%p338) target = $region16
        $region15: #{tpu_custom_call.1} parent=11 // pred_region
          %s341 = smul.u32 2, %s34
          %s343 = ssub.s32 128, 128
          %344 = vsyncadd [#allocation6], %s343
          %s345 = smul.addr %s341, 64
          %s346 = scalar_lea.hbm %s0, %s345
          %s347 = sshll.u32 [#allocation5], 4
          %s348 = int_to_ptr.vmem [resolvable:$true] %s347
          %353 = dma.hbm_to_vmem [thread:$0]  %s346, 128, %s348, [#allocation6], 64, 64, 4
        $region16: #{tpu_custom_call.1} parent=11 // pred_fallthru
          _
        // Predicated region
        $region17: #{tpu_custom_call.1} parent=11 // pred_check
          %p354 = pneg %p83
        $region18: #{tpu_custom_call.1} parent=11 // pred_check_branch
          %356 = sbr.rel (%p354) target = $region20
        $region19: #{tpu_custom_call.1} parent=11 // pred_region
          %s358 = ssub.s32 128, 128
          %359 = vsyncadd [#allocation9], %s358
          %s360 = sshll.u32 [#allocation8], 4
          %s361 = int_to_ptr.vmem [resolvable:$true] %s360
          %366 = dma.hbm_to_vmem [thread:$0]  %s1, 128, %s361, [#allocation9], 64, 64, 4
        $region20: #{tpu_custom_call.1} parent=11 // pred_fallthru
          _
        // Predicated region
        $region21: #{tpu_custom_call.1} parent=11 // pred_check
          %p367 = pneg %p104
        $region22: #{tpu_custom_call.1} parent=11 // pred_check_branch
          %369 = sbr.rel (%p367) target = $region24
        $region23: #{tpu_custom_call.1} parent=11 // pred_region
          %s371 = ssub.s32 128, 128
          %372 = vsyncadd [#allocation9], %s371
          %s374 = sshll.u32 [#allocation10], 4
          %s375 = int_to_ptr.vmem [resolvable:$true] %s374
          %377 = dma.hbm_to_vmem [thread:$0]  %s2, 128, %s375, [#allocation9]
        $region24: #{tpu_custom_call.1} parent=11 // pred_fallthru
          _
        // Predicated region
        $region25: #{tpu_custom_call.1} parent=11 // pred_check
          %p378 = pneg %p281
        $region26: #{tpu_custom_call.1} parent=11 // pred_check_branch
          %380 = sbr.rel (%p378) target = $region28
        $region27: #{tpu_custom_call.1} parent=11 // pred_region
          %s382 = ssub.s32 2048, 2048
          %383 = vsyncadd [#allocation15], %s382
          %s384 = sshll.u32 [#allocation14], 4
          %s385 = int_to_ptr.vmem [resolvable:$true] %s384
          %390 = dma.hbm_to_vmem [thread:$0]  %s9, 2048, %s385, [#allocation15], 128, 128, 8
        $region28: #{tpu_custom_call.1} parent=11 // pred_fallthru
          _
        // Predicated region
        $region29: #{tpu_custom_call.1} parent=11 // pred_check
          %p391 = pneg %p302
        $region30: #{tpu_custom_call.1} parent=11 // pred_check_branch
          %393 = sbr.rel (%p391) target = $region32
        $region31: #{tpu_custom_call.1} parent=11 // pred_region
          _
        $region32: #{tpu_custom_call.1} parent=11 // pred_fallthru
          _
      $region12: #{tpu_custom_call.1} parent=5 // pred_fallthru
        _
      %p394 = scmp.lt.s32.totalorder %s24, 2
      // Predicated region
      $region33: #{tpu_custom_call.1} parent=5 // pred_check
        %p395 = pneg %p394
      $region34: #{tpu_custom_call.1} parent=5 // pred_check_branch
        %397 = sbr.rel (%p395) target = $region36
      $region35: #{tpu_custom_call.1} parent=5 // pred_region
        // Predicated region
        $region37: #{tpu_custom_call.1} parent=35 // pred_check
          %p398 = pneg %p124
        $region38: #{tpu_custom_call.1} parent=35 // pred_check_branch
          %400 = sbr.rel (%p398) target = $region40
        $region39: #{tpu_custom_call.1} parent=35 // pred_region
          %s401 = sand.u32 %s24, 1
          %s402 = scalar_lea.sflag [#allocation12], %s401
          %s403 = sand.u32 %s114, 1
          %s404 = smul.addr %s403, 64
          %s405 = scalar_lea.vmem [#allocation11], %s404
          %s407 = ssub.s32 1024, 1024
          %408 = vsyncadd %s402, %s407
          %s409 = smul.addr %s31, 16
          %s410 = smul.addr %s409, 64
          %s411 = scalar_lea.hbm %s3, %s410
          %s412 = sshll.u32 %s405, 4
          %s413 = int_to_ptr.vmem [resolvable:$true] %s412
          %418 = dma.hbm_to_vmem [thread:$0]  %s411, 1024, %s413, %s402, 64, 64, 4
        $region40: #{tpu_custom_call.1} parent=35 // pred_fallthru
          _
        // Predicated region
        $region41: #{tpu_custom_call.1} parent=35 // pred_check
          %p419 = pneg %p150
        $region42: #{tpu_custom_call.1} parent=35 // pred_check_branch
          %421 = sbr.rel (%p419) target = $region44
        $region43: #{tpu_custom_call.1} parent=35 // pred_region
          %p422 = scmp.lt.s32.totalorder %s31, 1
          %s423 = scalar_select %p422, %s31, 1
          %s424 = scalar_lea.vmem %s4, %s423
        $region44: #{tpu_custom_call.1} parent=35 // pred_fallthru
          _
        // Predicated region
        $region45: #{tpu_custom_call.1} parent=35 // pred_check
          %p425 = pneg %p176
        $region46: #{tpu_custom_call.1} parent=35 // pred_check_branch
          %427 = sbr.rel (%p425) target = $region48
        $region47: #{tpu_custom_call.1} parent=35 // pred_region
          %s428 = sand.u32 %s24, 1
          %s429 = scalar_lea.sflag [#allocation12], %s428
          %s430 = sand.u32 %s166, 1
          %s431 = smul.addr %s430, 64
          %s432 = scalar_lea.vmem [#allocation13], %s431
          %s434 = ssub.s32 1024, 1024
          %435 = vsyncadd %s429, %s434
          %s436 = smul.addr %s31, 16
          %s437 = smul.addr %s436, 64
          %s438 = scalar_lea.hbm %s5, %s437
          %s439 = sshll.u32 %s432, 4
          %s440 = int_to_ptr.vmem [resolvable:$true] %s439
          %445 = dma.hbm_to_vmem [thread:$0]  %s438, 1024, %s440, %s429, 64, 64, 4
        $region48: #{tpu_custom_call.1} parent=35 // pred_fallthru
          _
        // Predicated region
        $region49: #{tpu_custom_call.1} parent=35 // pred_check
          %p446 = pneg %p202
        $region50: #{tpu_custom_call.1} parent=35 // pred_check_branch
          %448 = sbr.rel (%p446) target = $region52
        $region51: #{tpu_custom_call.1} parent=35 // pred_region
          %p449 = scmp.lt.s32.totalorder %s31, 1
          %s450 = scalar_select %p449, %s31, 1
          %s451 = scalar_lea.vmem %s6, %s450
        $region52: #{tpu_custom_call.1} parent=35 // pred_fallthru
          _
        // Predicated region
        $region53: #{tpu_custom_call.1} parent=35 // pred_check
          %p452 = pneg %p228
        $region54: #{tpu_custom_call.1} parent=35 // pred_check_branch
          %454 = sbr.rel (%p452) target = $region56
        $region55: #{tpu_custom_call.1} parent=35 // pred_region
          %p455 = scmp.lt.s32.totalorder %s31, 1
          %s456 = scalar_select %p455, %s31, 1
          %s457 = scalar_lea.vmem %s7, %s456
        $region56: #{tpu_custom_call.1} parent=35 // pred_fallthru
          _
        // Predicated region
        $region57: #{tpu_custom_call.1} parent=35 // pred_check
          %p458 = pneg %p254
        $region58: #{tpu_custom_call.1} parent=35 // pred_check_branch
          %460 = sbr.rel (%p458) target = $region60
        $region59: #{tpu_custom_call.1} parent=35 // pred_region
          %p461 = scmp.lt.s32.totalorder %s31, 1
          %s462 = scalar_select %p461, %s31, 1
          %s463 = scalar_lea.vmem %s8, %s462
        $region60: #{tpu_custom_call.1} parent=35 // pred_fallthru
          _
      $region36: #{tpu_custom_call.1} parent=5 // pred_fallthru
        _
      %p464 = scmp.le.s32.totalorder 1, %s24
      %p465 = scmp.lt.s32.totalorder %s24, 3
      %p466 = pnand %p464, %p465
      %p467 = pneg %p466
      // Predicated region
      $region61: #{tpu_custom_call.1} parent=5 // pred_check
        _
      $region62: #{tpu_custom_call.1} parent=5 // pred_check_branch
        %469 = sbr.rel (%p466) target = $region64
      $region63: #{tpu_custom_call.1} parent=5 // pred_region
        %s470 = ssub.s32 %s24, 1
        // Predicated region
        $region65: #{tpu_custom_call.1} parent=63 // pred_check
          %p471 = pneg %p62
        $region66: #{tpu_custom_call.1} parent=63 // pred_check_branch
          %473 = sbr.rel (%p471) target = $region68
        $region67: #{tpu_custom_call.1} parent=63 // pred_region
          %474 = dma.done [#allocation6], 128
        $region68: #{tpu_custom_call.1} parent=63 // pred_fallthru
          _
        // Predicated region
        $region69: #{tpu_custom_call.1} parent=63 // pred_check
          %p475 = pneg %p83
        $region70: #{tpu_custom_call.1} parent=63 // pred_check_branch
          %477 = sbr.rel (%p475) target = $region72
        $region71: #{tpu_custom_call.1} parent=63 // pred_region
          %478 = dma.done [#allocation9], 128
        $region72: #{tpu_custom_call.1} parent=63 // pred_fallthru
          _
        // Predicated region
        $region73: #{tpu_custom_call.1} parent=63 // pred_check
          %p479 = pneg %p104
        $region74: #{tpu_custom_call.1} parent=63 // pred_check_branch
          %481 = sbr.rel (%p479) target = $region76
        $region75: #{tpu_custom_call.1} parent=63 // pred_region
          %482 = dma.done [#allocation9], 128
        $region76: #{tpu_custom_call.1} parent=63 // pred_fallthru
          _
        %s483 = sand.u32 %s29, 1
        %s484 = scalar_lea.sflag [#allocation12], %s483
        %s485 = sand.u32 %s117, 1
        %s486 = smul.addr %s485, 64
        %s487 = scalar_lea.vmem [#allocation11], %s486
        // Predicated region
        $region77: #{tpu_custom_call.1} parent=63 // pred_check
          %p488 = pneg %p130
        $region78: #{tpu_custom_call.1} parent=63 // pred_check_branch
          %490 = sbr.rel (%p488) target = $region80
        $region79: #{tpu_custom_call.1} parent=63 // pred_region
          %491 = dma.done %s484, 1024
        $region80: #{tpu_custom_call.1} parent=63 // pred_fallthru
          _
        %s492 = sand.u32 %s29, 1
        %s493 = scalar_lea.sflag [#allocation12], %s492
        %s494 = sand.u32 %s169, 1
        %s495 = smul.addr %s494, 64
        %s496 = scalar_lea.vmem [#allocation13], %s495
        // Predicated region
        $region81: #{tpu_custom_call.1} parent=63 // pred_check
          %p497 = pneg %p182
        $region82: #{tpu_custom_call.1} parent=63 // pred_check_branch
          %499 = sbr.rel (%p497) target = $region84
        $region83: #{tpu_custom_call.1} parent=63 // pred_region
          %500 = dma.done %s493, 1024
        $region84: #{tpu_custom_call.1} parent=63 // pred_fallthru
          _
        // Predicated region
        $region85: #{tpu_custom_call.1} parent=63 // pred_check
          %p501 = pneg %p281
        $region86: #{tpu_custom_call.1} parent=63 // pred_check_branch
          %503 = sbr.rel (%p501) target = $region88
        $region87: #{tpu_custom_call.1} parent=63 // pred_region
          %504 = dma.done [#allocation15], 2048
        $region88: #{tpu_custom_call.1} parent=63 // pred_fallthru
          _
        %p505 = pneg %p62
        %p506 = pneg %p59
        %p507 = pneg %p83
        %p508 = pneg %p80
        %p509 = pneg %p104
        %p510 = pneg %p101
        %s511 = sand.u32 %s29, 1
        %s512 = scalar_lea.sflag [#allocation12], %s511
        %s513 = sand.u32 %s117, 1
        %s514 = smul.addr %s513, 64
        %s515 = scalar_lea.vmem [#allocation11], %s514
        %p516 = pneg %p130
        %p517 = pneg %p127
        %p518 = scmp.lt.s32.totalorder %s33, 1
        %s519 = scalar_select %p518, %s33, 1
        %s520 = scalar_lea.vmem %s4, %s519
        %p521 = pneg %p156
        %p522 = pneg %p153
        %s523 = sand.u32 %s29, 1
        %s524 = scalar_lea.sflag [#allocation12], %s523
        %s525 = sand.u32 %s169, 1
        %s526 = smul.addr %s525, 64
        %s527 = scalar_lea.vmem [#allocation13], %s526
        %p528 = pneg %p182
        %p529 = pneg %p179
        %p530 = scmp.lt.s32.totalorder %s33, 1
        %s531 = scalar_select %p530, %s33, 1
        %s532 = scalar_lea.vmem %s6, %s531
        %p533 = pneg %p208
        %p534 = pneg %p205
        %p535 = scmp.lt.s32.totalorder %s33, 1
        %s536 = scalar_select %p535, %s33, 1
        %s537 = scalar_lea.vmem %s7, %s536
        %p538 = pneg %p234
        %p539 = pneg %p231
        %p540 = scmp.lt.s32.totalorder %s33, 1
        %s541 = scalar_select %p540, %s33, 1
        %s542 = scalar_lea.vmem %s8, %s541
        %p543 = pneg %p260
        %p544 = pneg %p257
        %p545 = pneg %p281
        %p546 = pneg %p278
        %p547 = pneg %p302
        %p548 = pneg %p299
        %p549 = pneg %p323
        %p550 = pneg %p320
        %s551 = smul.u32 2, %s34
        %p552 = scmp.lt.s32.totalorder %s33, 1
        %s553 = scalar_select %p552, %s33, 1
        %s554 = scalar_lea.vmem %s4, %s553
        %p555 = scmp.lt.s32.totalorder %s33, 1
        %s556 = scalar_select %p555, %s33, 1
        %s557 = scalar_lea.vmem %s6, %s556
        %p558 = scmp.lt.s32.totalorder %s33, 1
        %s559 = scalar_select %p558, %s33, 1
        %s560 = scalar_lea.vmem %s7, %s559
        %p561 = scmp.lt.s32.totalorder %s33, 1
        %s562 = scalar_select %p561, %s33, 1
        %s563 = scalar_lea.vmem %s8, %s562
        %p565 = scmp.eq.s32.totalorder %s33, 0
        %p566 = scmp.eq.s32.totalorder %s34, 0
        %p567 = pnand %p565, %p566
        %p568 = pneg %p567
        // Predicated region
        $region89: #{tpu_custom_call.1} parent=63 // pred_check
          _
        $region90: #{tpu_custom_call.1} parent=63 // pred_check_branch
          %570 = sbr.rel (%p567) target = $region92
        $region91: #{tpu_custom_call.1} parent=63 // pred_region
          %v571 = vld [vmem:[#allocation8] sm:$0xf]
          %v572 = vld [vmem:[#allocation8 + $0x4] sm:$0xf]
          %v575 = vunpack.c.l.b16 %v571
          %v576 = vunpack.c.l.b16 %v572
          %v577 = vpack.c.b16 %v576, %v575
          %579 = vst [vmem:[#allocation2] sm:$0xff] %v577
        $region92: #{tpu_custom_call.1} parent=63 // pred_fallthru
          _
        // Predicated region
        $region93: #{tpu_custom_call.1} parent=63 // pred_check
          %p580 = pneg %p566
        $region94: #{tpu_custom_call.1} parent=63 // pred_check_branch
          %582 = sbr.rel (%p580) target = $region96
        $region95: #{tpu_custom_call.1} parent=63 // pred_region
          %583 = vst [vmem:[#allocation4] sm:$0x1] 0.0
        $region96: #{tpu_custom_call.1} parent=63 // pred_fallthru
          _
        %v584 = vld [vmem:[#allocation5] sm:$0xf]
        %v585 = vld [vmem:[#allocation5 + $0x4] sm:$0xf]
        %v586 = vld [vmem:[#allocation2] sm:$0xff]
        %v589 = vunpack.c.l.b16 %v584
        %v590 = vunpack.c.l.b16 %v585
        %v591 = vpack.c.b16 %v590, %v589
        %vm592 = vcmask 130048
        %v594 = vsel %vm592, %v591, 0
        %596 = vmatprep.subr.bf16.mxu0 0
        %597 = vmatpush1.bf16.msra.mxu0 %v586
        %598 = vmatprep.subr.bf16.mxu0 0
        %599 = vmatpush1.bf16.msra.mxu0 0
        %600 = vmatprep.subr.bf16.mxu0 0
        %601 = vmatpush1.bf16.msra.mxu0 0
        %602 = vmatprep.subr.bf16.mxu0 0
        %603 = vmatpush1.bf16.msra.mxu0 0
        %604 = vmatprep.subr.bf16.mxu0 0
        %605 = vmatpush1.bf16.msra.mxu0 0
        %606 = vmatprep.subr.bf16.mxu0 0
        %607 = vmatpush1.bf16.msra.mxu0 0
        %608 = vmatprep.subr.bf16.mxu0 0
        %609 = vmatpush1.bf16.msra.mxu0 0
        %610 = vmatprep.subr.bf16.mxu0 0
        %611 = vmatpush1.bf16.msra.mxu0 0
        %612 = vmatprep.subr.bf16.mxu0 0
        %613 = vmatpush1.bf16.msra.mxu0 0
        %614 = vmatprep.subr.bf16.mxu0 0
        %615 = vmatpush1.bf16.msra.mxu0 0
        %616 = vmatprep.subr.bf16.mxu0 0
        %617 = vmatpush1.bf16.msra.mxu0 0
        %618 = vmatprep.subr.bf16.mxu0 0
        %619 = vmatpush1.bf16.msra.mxu0 0
        %620 = vmatprep.subr.bf16.mxu0 0
        %621 = vmatpush1.bf16.msra.mxu0 0
        %622 = vmatprep.subr.bf16.mxu0 0
        %623 = vmatpush1.bf16.msra.mxu0 0
        %624 = vmatprep.subr.bf16.mxu0 0
        %625 = vmatpush1.bf16.msra.mxu0 0
        %626 = vmatprep.subr.bf16.mxu0 0
        %627 = vmatpush1.bf16.msra.mxu0 0
        %628 = vmatprep.mubr.bf16.mxu0 0
        %629 = vmatmul.mubr.bf16.gmra.mrb[0].mxu0 %v594
        %v630 = vpop.f32.mrb[0].mxu0
        %v631 = vadd.f32 0.0, %v630
        %v632 = vpop.f32.mrb[0].mxu0
        %v633 = vpop.f32.mrb[0].mxu0
        %v634 = vadd.f32 0.0, %v633
        %v635 = vpop.f32.mrb[0].mxu0
        %636 = vdwg.mxu0
        %v637 = vpack.c.bf16 %v634, %v631
        %v638 = vld [vmem:[%s487] sm:$0xf]
        %v639 = vld [vmem:[%s487 + $0x4] sm:$0xf]
        %v640 = vld [vmem:[%s487 + $0x8] sm:$0xf]
        %v641 = vld [vmem:[%s487 + $0xc] sm:$0xf]
        %v642 = vld [vmem:[%s487 + $0x10] sm:$0xf]
        %v643 = vld [vmem:[%s487 + $0x14] sm:$0xf]
        %v644 = vld [vmem:[%s487 + $0x18] sm:$0xf]
        %v645 = vld [vmem:[%s487 + $0x1c] sm:$0xf]
        %v646 = vld [vmem:[%s487 + $0x20] sm:$0xf]
        %v647 = vld [vmem:[%s487 + $0x24] sm:$0xf]
        %v648 = vld [vmem:[%s487 + $0x28] sm:$0xf]
        %v649 = vld [vmem:[%s487 + $0x2c] sm:$0xf]
        %v650 = vld [vmem:[%s487 + $0x30] sm:$0xf]
        %v651 = vld [vmem:[%s487 + $0x34] sm:$0xf]
        %v652 = vld [vmem:[%s487 + $0x38] sm:$0xf]
        %v653 = vld [vmem:[%s487 + $0x3c] sm:$0xf]
        %v654 = vld [vmem:[%s554] sm:$0x1]
        %v656 = vlaneseq
        %v657 = vshrl.u32 %v656, 7
        %v658 = vsub.s32 0, %v657
        %v659 = vrot.slane %v654, %v658
        %v677 = vunpack.c.l.b16 %v638
        %v678 = vunpack.c.l.b16 %v639
        %v679 = vunpack.c.l.b16 %v640
        %v680 = vunpack.c.l.b16 %v641
        %v681 = vunpack.c.l.b16 %v642
        %v682 = vunpack.c.l.b16 %v643
        %v683 = vunpack.c.l.b16 %v644
        %v684 = vunpack.c.l.b16 %v645
        %v685 = vunpack.c.l.b16 %v646
        %v686 = vunpack.c.l.b16 %v647
        %v687 = vunpack.c.l.b16 %v648
        %v688 = vunpack.c.l.b16 %v649
        %v689 = vunpack.c.l.b16 %v650
        %v690 = vunpack.c.l.b16 %v651
        %v691 = vunpack.c.l.b16 %v652
        %v692 = vunpack.c.l.b16 %v653
        %v693 = vpack.c.b16 %v678, %v677
        %v694 = vpack.c.b16 %v680, %v679
        %v695 = vpack.c.b16 %v682, %v681
        %v696 = vpack.c.b16 %v684, %v683
        %v697 = vpack.c.b16 %v686, %v685
        %v698 = vpack.c.b16 %v688, %v687
        %v699 = vpack.c.b16 %v690, %v689
        %v700 = vpack.c.b16 %v692, %v691
        %709 = vmatprep.subr.bf16.mxu0 0
        %710 = vmatpush1.bf16.msra.mxu0 %v693
        %711 = vmatprep.subr.bf16.mxu0 0
        %712 = vmatpush1.bf16.msra.mxu0 %v694
        %713 = vmatprep.subr.bf16.mxu0 0
        %714 = vmatpush1.bf16.msra.mxu0 %v695
        %715 = vmatprep.subr.bf16.mxu0 0
        %716 = vmatpush1.bf16.msra.mxu0 %v696
        %717 = vmatprep.subr.bf16.mxu0 0
        %718 = vmatpush1.bf16.msra.mxu0 %v697
        %719 = vmatprep.subr.bf16.mxu0 0
        %720 = vmatpush1.bf16.msra.mxu0 %v698
        %721 = vmatprep.subr.bf16.mxu0 0
        %722 = vmatpush1.bf16.msra.mxu0 %v699
        %723 = vmatprep.subr.bf16.mxu0 0
        %724 = vmatpush1.bf16.msra.mxu0 %v700
        %725 = vmatprep.subr.bf16.mxu0 0
        %726 = vmatpush1.bf16.msra.mxu0 0
        %727 = vmatprep.subr.bf16.mxu0 0
        %728 = vmatpush1.bf16.msra.mxu0 0
        %729 = vmatprep.subr.bf16.mxu0 0
        %730 = vmatpush1.bf16.msra.mxu0 0
        %731 = vmatprep.subr.bf16.mxu0 0
        %732 = vmatpush1.bf16.msra.mxu0 0
        %733 = vmatprep.subr.bf16.mxu0 0
        %734 = vmatpush1.bf16.msra.mxu0 0
        %735 = vmatprep.subr.bf16.mxu0 0
        %736 = vmatpush1.bf16.msra.mxu0 0
        %737 = vmatprep.subr.bf16.mxu0 0
        %738 = vmatpush1.bf16.msra.mxu0 0
        %739 = vmatprep.subr.bf16.mxu0 0
        %740 = vmatpush1.bf16.msra.mxu0 0
        %741 = vmatprep.mubr.bf16.mxu0 0
        %742 = vmatmul.mubr.bf16.gmra.mrb[0].mxu0 %v637
        %v743 = vpop.f32.mrb[0].mxu0
        %v744 = vadd.f32 %v659, %v743
        %v745 = vpop.f32.mrb[0].mxu0
        %v746 = vpop.f32.mrb[0].mxu0
        %v747 = vadd.f32 %v659, %v746
        %v748 = vpop.f32.mrb[0].mxu0
        %749 = vdwg.mxu0
        %vm750 = vcmp.ge.f32.partialorder %v744, 0.0
        %vm751 = vcmp.ge.f32.partialorder %v747, 0.0
        %v752 = vmul.f32 %v744, 0.01
        %v753 = vmul.f32 %v747, 0.01
        %v754 = vsel %vm750, %v744, %v752
        %v755 = vsel %vm751, %v747, %v753
        %v756 = vpack.c.bf16 %v755, %v754
        %v757 = vld [vmem:[%s496] sm:$0xf]
        %v758 = vld [vmem:[%s496 + $0x4] sm:$0xf]
        %v759 = vld [vmem:[%s496 + $0x8] sm:$0xf]
        %v760 = vld [vmem:[%s496 + $0xc] sm:$0xf]
        %v761 = vld [vmem:[%s496 + $0x10] sm:$0xf]
        %v762 = vld [vmem:[%s496 + $0x14] sm:$0xf]
        %v763 = vld [vmem:[%s496 + $0x18] sm:$0xf]
        %v764 = vld [vmem:[%s496 + $0x1c] sm:$0xf]
        %v765 = vld [vmem:[%s496 + $0x20] sm:$0xf]
        %v766 = vld [vmem:[%s496 + $0x24] sm:$0xf]
        %v767 = vld [vmem:[%s496 + $0x28] sm:$0xf]
        %v768 = vld [vmem:[%s496 + $0x2c] sm:$0xf]
        %v769 = vld [vmem:[%s496 + $0x30] sm:$0xf]
        %v770 = vld [vmem:[%s496 + $0x34] sm:$0xf]
        %v771 = vld [vmem:[%s496 + $0x38] sm:$0xf]
        %v772 = vld [vmem:[%s496 + $0x3c] sm:$0xf]
        %v773 = vld [vmem:[%s557] sm:$0x1]
        %v775 = vlaneseq
        %v776 = vshrl.u32 %v775, 7
        %v777 = vsub.s32 0, %v776
        %v778 = vrot.slane %v773, %v777
        %v796 = vunpack.c.l.b16 %v757
        %v797 = vunpack.c.l.b16 %v758
        %v798 = vunpack.c.l.b16 %v759
        %v799 = vunpack.c.l.b16 %v760
        %v800 = vunpack.c.l.b16 %v761
        %v801 = vunpack.c.l.b16 %v762
        %v802 = vunpack.c.l.b16 %v763
        %v803 = vunpack.c.l.b16 %v764
        %v804 = vunpack.c.l.b16 %v765
        %v805 = vunpack.c.l.b16 %v766
        %v806 = vunpack.c.l.b16 %v767
        %v807 = vunpack.c.l.b16 %v768
        %v808 = vunpack.c.l.b16 %v769
        %v809 = vunpack.c.l.b16 %v770
        %v810 = vunpack.c.l.b16 %v771
        %v811 = vunpack.c.l.b16 %v772
        %v812 = vpack.c.b16 %v797, %v796
        %v813 = vpack.c.b16 %v799, %v798
        %v814 = vpack.c.b16 %v801, %v800
        %v815 = vpack.c.b16 %v803, %v802
        %v816 = vpack.c.b16 %v805, %v804
        %v817 = vpack.c.b16 %v807, %v806
        %v818 = vpack.c.b16 %v809, %v808
        %v819 = vpack.c.b16 %v811, %v810
        %828 = vmatprep.subr.bf16.mxu0 0
        %829 = vmatpush1.bf16.msra.mxu0 %v812
        %830 = vmatprep.subr.bf16.mxu0 0
        %831 = vmatpush1.bf16.msra.mxu0 %v813
        %832 = vmatprep.subr.bf16.mxu0 0
        %833 = vmatpush1.bf16.msra.mxu0 %v814
        %834 = vmatprep.subr.bf16.mxu0 0
        %835 = vmatpush1.bf16.msra.mxu0 %v815
        %836 = vmatprep.subr.bf16.mxu0 0
        %837 = vmatpush1.bf16.msra.mxu0 %v816
        %838 = vmatprep.subr.bf16.mxu0 0
        %839 = vmatpush1.bf16.msra.mxu0 %v817
        %840 = vmatprep.subr.bf16.mxu0 0
        %841 = vmatpush1.bf16.msra.mxu0 %v818
        %842 = vmatprep.subr.bf16.mxu0 0
        %843 = vmatpush1.bf16.msra.mxu0 %v819
        %844 = vmatprep.subr.bf16.mxu0 0
        %845 = vmatpush1.bf16.msra.mxu0 0
        %846 = vmatprep.subr.bf16.mxu0 0
        %847 = vmatpush1.bf16.msra.mxu0 0
        %848 = vmatprep.subr.bf16.mxu0 0
        %849 = vmatpush1.bf16.msra.mxu0 0
        %850 = vmatprep.subr.bf16.mxu0 0
        %851 = vmatpush1.bf16.msra.mxu0 0
        %852 = vmatprep.subr.bf16.mxu0 0
        %853 = vmatpush1.bf16.msra.mxu0 0
        %854 = vmatprep.subr.bf16.mxu0 0
        %855 = vmatpush1.bf16.msra.mxu0 0
        %856 = vmatprep.subr.bf16.mxu0 0
        %857 = vmatpush1.bf16.msra.mxu0 0
        %858 = vmatprep.subr.bf16.mxu0 0
        %859 = vmatpush1.bf16.msra.mxu0 0
        %860 = vmatprep.mubr.bf16.mxu0 0
        %861 = vmatmul.mubr.bf16.gmra.mrb[0].mxu0 %v756
        %v862 = vpop.f32.mrb[0].mxu0
        %v863 = vadd.f32 %v778, %v862
        %v864 = vpop.f32.mrb[0].mxu0
        %v865 = vpop.f32.mrb[0].mxu0
        %v866 = vadd.f32 %v778, %v865
        %v867 = vpop.f32.mrb[0].mxu0
        %868 = vdwg.mxu0
        %v869 = vlaneseq
        %v870 = vshrl.u32 %v869, 7
        %v871 = vadd.s32 %v870, 8
        %s872 = smul.u32 %s34, 16
        %v873 = vstv %s872
        %v874 = vadd.s32 %v870, %v873
        %v875 = vadd.s32 %v871, %v873
        %vm876 = vcmp.lt.s32.totalorder %v874, 16
        %vm877 = vcmp.lt.s32.totalorder %v875, 16
        %v878 = vsel %vm876, 1, 0
        %v879 = vsel %vm877, 1, 0
        %vm880 = vcmp.eq.s32.totalorder %v878, 1
        %vm881 = vcmp.eq.s32.totalorder %v879, 1
        %v882 = vsel %vm880, %v863, 0.0
        %v883 = vsel %vm881, %v866, 0.0
        %s884 = scalar_lea.vmem [#allocation3], %s872
        %885 = vst [vmem:[%s884] sm:$0xff] %v882
        %886 = vst [vmem:[%s884 + $0x8] sm:$0xff] %v883
        %v887 = vld [vmem:[#allocation4] sm:$0x1]
        %v888 = vadd.f32 %v882, %v883
        %v889 = vrot.slane %v888, 4
        %v890 = vadd.f32 %v888, %v889
        %v891 = vrot.slane %v890, 2
        %v892 = vadd.f32 %v890, %v891
        %v893 = vrot.slane %v892, 1
        %v894 = vadd.f32 %v892, %v893
        %v895 = vadd.f32 %v887, %v894
        %896 = vst [vmem:[#allocation4] sm:$0x1] %v895
        // Predicated region
        $region97: #{tpu_custom_call.1} parent=63 // pred_check
          %p897 = pneg %p566
        $region98: #{tpu_custom_call.1} parent=63 // pred_check_branch
          %899 = sbr.rel (%p897) target = $region100
        $region99: #{tpu_custom_call.1} parent=63 // pred_region
          %v900 = vld [vmem:[#allocation4] sm:$0x1]
          %v901 = vmul.f32 %v900, 0.0625
          %v902 = vld [vmem:[#allocation3] sm:$0xff]
          %v903 = vld [vmem:[#allocation3 + $0x8] sm:$0xff]
          %vm904 = vcmp.lt.s32.totalorder %v870, 16
          %vm905 = vcmp.lt.s32.totalorder %v871, 16
          %v907 = vlaneseq
          %v908 = vshrl.u32 %v907, 7
          %v909 = vsub.s32 0, %v908
          %v910 = vrot.slane %v901, %v909
          %v912 = vsub.f32 %v902, %v910
          %v913 = vsub.f32 %v903, %v910
          %v914 = vsel %vm904, 1, 0
          %v915 = vsel %vm905, 1, 0
          %vm916 = vcmp.eq.s32.totalorder %v914, 1
          %vm917 = vcmp.eq.s32.totalorder %v915, 1
          %v918 = vsel %vm916, %v912, 0.0
          %v919 = vsel %vm917, %v913, 0.0
          %v920 = vmul.f32 %v918, %v918
          %v921 = vmul.f32 %v919, %v919
          %v922 = vadd.f32 %v920, %v921
          %v923 = vrot.slane %v922, 4
          %v924 = vadd.f32 %v922, %v923
          %v925 = vrot.slane %v924, 2
          %v926 = vadd.f32 %v924, %v925
          %v927 = vrot.slane %v926, 1
          %v928 = vadd.f32 %v926, %v927
          %v929 = vmul.f32 %v928, 0.0625
          %v930 = vld [vmem:[%s560] sm:$0x1]
          %v932 = vlaneseq
          %v933 = vshrl.u32 %v932, 7
          %v934 = vsub.s32 0, %v933
          %v935 = vrot.slane %v930, %v934
          %v937 = vmul.f32 %v935, %v918
          %v938 = vmul.f32 %v935, %v919
          %v939 = vadd.f32 %v929, 1e-05
          %v940 = vrsqrt.pop %v939
          %v941 = vmul.f32 %v937, %v940
          %v942 = vmul.f32 %v938, %v940
          %v943 = vld [vmem:[%s563] sm:$0x1]
          %v945 = vlaneseq
          %v946 = vshrl.u32 %v945, 7
          %v947 = vsub.s32 0, %v946
          %v948 = vrot.slane %v943, %v947
          %v950 = vadd.f32 %v941, %v948
          %v951 = vadd.f32 %v942, %v948
          %p952 = scmp.lt.s32.totalorder %s33, 1
          // Predicated region
          $region101: #{tpu_custom_call.1} parent=99 // pred_check
            %p953 = pneg %p952
          $region102: #{tpu_custom_call.1} parent=99 // pred_check_branch
            %955 = sbr.rel (%p953) target = $region104
          $region103: #{tpu_custom_call.1} parent=99 // pred_region
            %vm956 = vcmp.ge.f32.partialorder %v950, 0.0
            %vm957 = vcmp.ge.f32.partialorder %v951, 0.0
            %v958 = vmul.f32 %v950, 0.01
            %v959 = vmul.f32 %v951, 0.01
            %v960 = vsel %vm956, %v950, %v958
            %v961 = vsel %vm957, %v951, %v959
            %v962 = vsel %vm916, %v960, 0.0
            %v963 = vsel %vm917, %v961, 0.0
            %v964 = vpack.c.bf16 %v963, %v962
            %965 = vst [vmem:[#allocation2] sm:$0xff] %v964
          $region104: #{tpu_custom_call.1} parent=99 // pred_fallthru
            _
          %p966 = scmp.eq.s32.totalorder %s33, 1
          // Predicated region
          $region105: #{tpu_custom_call.1} parent=99 // pred_check
            %p967 = pneg %p966
          $region106: #{tpu_custom_call.1} parent=99 // pred_check_branch
            %969 = sbr.rel (%p967) target = $region108
          $region107: #{tpu_custom_call.1} parent=99 // pred_region
            %v970 = vsel %vm916, %v950, 0.0
            %v971 = vsel %vm917, %v951, 0.0
            %v972 = vld [vmem:[#allocation10] sm:$0xff]
            %v974 = vsel %vm592, %v972, 0
            %976 = vmatprep.subr.mxu0 0.0
            %977 = vmatpush1.msra.mxu0 %v970
            %978 = vmatprep.subr.mxu0 0.0
            %979 = vmatpush1.msra.mxu0 %v971
            %980 = vmatprep.subr.mxu0 0.0
            %981 = vmatpush1.msra.mxu0 0.0
            %982 = vmatprep.subr.mxu0 0.0
            %983 = vmatpush1.msra.mxu0 0.0
            %984 = vmatprep.subr.mxu0 0.0
            %985 = vmatpush1.msra.mxu0 0.0
            %986 = vmatprep.subr.mxu0 0.0
            %987 = vmatpush1.msra.mxu0 0.0
            %988 = vmatprep.subr.mxu0 0.0
            %989 = vmatpush1.msra.mxu0 0.0
            %990 = vmatprep.subr.mxu0 0.0
            %991 = vmatpush1.msra.mxu0 0.0
            %992 = vmatprep.subr.mxu0 0.0
            %993 = vmatpush1.msra.mxu0 0.0
            %994 = vmatprep.subr.mxu0 0.0
            %995 = vmatpush1.msra.mxu0 0.0
            %996 = vmatprep.subr.mxu0 0.0
            %997 = vmatpush1.msra.mxu0 0.0
            %998 = vmatprep.subr.mxu0 0.0
            %999 = vmatpush1.msra.mxu0 0.0
            %1000 = vmatprep.subr.mxu0 0.0
            %1001 = vmatpush1.msra.mxu0 0.0
            %1002 = vmatprep.subr.mxu0 0.0
            %1003 = vmatpush1.msra.mxu0 0.0
            %1004 = vmatprep.subr.mxu0 0.0
            %1005 = vmatpush1.msra.mxu0 0.0
            %1006 = vmatprep.subr.mxu0 0.0
            %1007 = vmatpush1.msra.mxu0 0.0
            %1008 = vmatprep.subr.mxu0 0.0
            %1009 = vmatpush1.msra.mxu0 0.0
            %1010 = vmatprep.subr.mxu0 0.0
            %1011 = vmatpush1.msra.mxu0 0.0
            %1012 = vmatprep.subr.mxu0 0.0
            %1013 = vmatpush1.msra.mxu0 0.0
            %1014 = vmatprep.subr.mxu0 0.0
            %1015 = vmatpush1.msra.mxu0 0.0
            %1016 = vmatprep.subr.mxu0 0.0
            %1017 = vmatpush1.msra.mxu0 0.0
            %1018 = vmatprep.subr.mxu0 0.0
            %1019 = vmatpush1.msra.mxu0 0.0
            %1020 = vmatprep.subr.mxu0 0.0
            %1021 = vmatpush1.msra.mxu0 0.0
            %1022 = vmatprep.subr.mxu0 0.0
            %1023 = vmatpush1.msra.mxu0 0.0
            %1024 = vmatprep.subr.mxu0 0.0
            %1025 = vmatpush1.msra.mxu0 0.0
            %1026 = vmatprep.subr.mxu0 0.0
            %1027 = vmatpush1.msra.mxu0 0.0
            %1028 = vmatprep.subr.mxu0 0.0
            %1029 = vmatpush1.msra.mxu0 0.0
            %1030 = vmatprep.subr.mxu0 0.0
            %1031 = vmatpush1.msra.mxu0 0.0
            %1032 = vmatprep.subr.mxu0 0.0
            %1033 = vmatpush1.msra.mxu0 0.0
            %1034 = vmatprep.subr.mxu0 0.0
            %1035 = vmatpush1.msra.mxu0 0.0
            %1036 = vmatprep.subr.mxu0 0.0
            %1037 = vmatpush1.msra.mxu0 0.0
            %1038 = vmatprep.subr.mxu0 0.0
            %1039 = vmatpush1.msra.mxu0 0.0
            %1040 = vmatprep.mubr.f32.mxu0 0.0
            %1041 = vmatmul.mubr.f32.gmra.mrb[0].mxu0 %v974
            %v1042 = vpop.f32.mrb[0].mxu0
            %v1043 = vadd.f32 0.0, %v1042
            %v1044 = vpop.f32.mrb[0].mxu0
            %1045 = vdwg.mxu0
            %v1046 = vld [vmem:[#allocation14] sm:$0xff]
            %v1047 = vld [vmem:[#allocation14 + $0x8] sm:$0xff]
            %v1048 = vld [vmem:[#allocation14 + $0x10] sm:$0xff]
            %v1049 = vld [vmem:[#allocation14 + $0x18] sm:$0xff]
            %v1050 = vld [vmem:[#allocation14 + $0x20] sm:$0xff]
            %v1051 = vld [vmem:[#allocation14 + $0x28] sm:$0xff]
            %v1052 = vld [vmem:[#allocation14 + $0x30] sm:$0xff]
            %v1053 = vld [vmem:[#allocation14 + $0x38] sm:$0xff]
            %v1054 = vld [vmem:[#allocation14 + $0x40] sm:$0xff]
            %v1055 = vld [vmem:[#allocation14 + $0x48] sm:$0xff]
            %v1056 = vld [vmem:[#allocation14 + $0x50] sm:$0xff]
            %v1057 = vld [vmem:[#allocation14 + $0x58] sm:$0xff]
            %v1058 = vld [vmem:[#allocation14 + $0x60] sm:$0xff]
            %v1059 = vld [vmem:[#allocation14 + $0x68] sm:$0xff]
            %v1060 = vld [vmem:[#allocation14 + $0x70] sm:$0xff]
            %v1061 = vld [vmem:[#allocation14 + $0x78] sm:$0xff]
            %v1062 = vld [vmem:[%s10] sm:$0x1]
            %v1064 = vlaneseq
            %v1065 = vshrl.u32 %v1064, 7
            %v1066 = vsub.s32 0, %v1065
            %v1067 = vrot.slane %v1062, %v1066
            %1069 = vmatprep.subr.mxu0 0.0
            %1070 = vmatpush1.msra.mxu0 %v1046
            %1071 = vmatprep.subr.mxu0 0.0
            %1072 = vmatpush1.msra.mxu0 %v1047
            %1073 = vmatprep.subr.mxu0 0.0
            %1074 = vmatpush1.msra.mxu0 %v1048
            %1075 = vmatprep.subr.mxu0 0.0
            %1076 = vmatpush1.msra.mxu0 %v1049
            %1077 = vmatprep.subr.mxu0 0.0
            %1078 = vmatpush1.msra.mxu0 %v1050
            %1079 = vmatprep.subr.mxu0 0.0
            %1080 = vmatpush1.msra.mxu0 %v1051
            %1081 = vmatprep.subr.mxu0 0.0
            %1082 = vmatpush1.msra.mxu0 %v1052
            %1083 = vmatprep.subr.mxu0 0.0
            %1084 = vmatpush1.msra.mxu0 %v1053
            %1085 = vmatprep.subr.mxu0 0.0
            %1086 = vmatpush1.msra.mxu0 %v1054
            %1087 = vmatprep.subr.mxu0 0.0
            %1088 = vmatpush1.msra.mxu0 %v1055
            %1089 = vmatprep.subr.mxu0 0.0
            %1090 = vmatpush1.msra.mxu0 %v1056
            %1091 = vmatprep.subr.mxu0 0.0
            %1092 = vmatpush1.msra.mxu0 %v1057
            %1093 = vmatprep.subr.mxu0 0.0
            %1094 = vmatpush1.msra.mxu0 %v1058
            %1095 = vmatprep.subr.mxu0 0.0
            %1096 = vmatpush1.msra.mxu0 %v1059
            %1097 = vmatprep.subr.mxu0 0.0
            %1098 = vmatpush1.msra.mxu0 %v1060
            %1099 = vmatprep.subr.mxu0 0.0
            %1100 = vmatpush1.msra.mxu0 %v1061
            %1101 = vmatprep.subr.mxu0 0.0
            %1102 = vmatpush1.msra.mxu0 0.0
            %1103 = vmatprep.subr.mxu0 0.0
            %1104 = vmatpush1.msra.mxu0 0.0
            %1105 = vmatprep.subr.mxu0 0.0
            %1106 = vmatpush1.msra.mxu0 0.0
            %1107 = vmatprep.subr.mxu0 0.0
            %1108 = vmatpush1.msra.mxu0 0.0
            %1109 = vmatprep.subr.mxu0 0.0
            %1110 = vmatpush1.msra.mxu0 0.0
            %1111 = vmatprep.subr.mxu0 0.0
            %1112 = vmatpush1.msra.mxu0 0.0
            %1113 = vmatprep.subr.mxu0 0.0
            %1114 = vmatpush1.msra.mxu0 0.0
            %1115 = vmatprep.subr.mxu0 0.0
            %1116 = vmatpush1.msra.mxu0 0.0
            %1117 = vmatprep.subr.mxu0 0.0
            %1118 = vmatpush1.msra.mxu0 0.0
            %1119 = vmatprep.subr.mxu0 0.0
            %1120 = vmatpush1.msra.mxu0 0.0
            %1121 = vmatprep.subr.mxu0 0.0
            %1122 = vmatpush1.msra.mxu0 0.0
            %1123 = vmatprep.subr.mxu0 0.0
            %1124 = vmatpush1.msra.mxu0 0.0
            %1125 = vmatprep.subr.mxu0 0.0
            %1126 = vmatpush1.msra.mxu0 0.0
            %1127 = vmatprep.subr.mxu0 0.0
            %1128 = vmatpush1.msra.mxu0 0.0
            %1129 = vmatprep.subr.mxu0 0.0
            %1130 = vmatpush1.msra.mxu0 0.0
            %1131 = vmatprep.subr.mxu0 0.0
            %1132 = vmatpush1.msra.mxu0 0.0
            %1133 = vmatprep.mubr.f32.mxu0 0.0
            %1134 = vmatmul.mubr.f32.gmra.mrb[0].mxu0 %v1043
            %v1135 = vpop.f32.mrb[0].mxu0
            %v1136 = vadd.f32 %v1067, %v1135
            %v1137 = vpop.f32.mrb[0].mxu0
            %1138 = vdwg.mxu0
            %1139 = vst [vmem:[#allocation16] sm:$0xff] %v1136
          $region108: #{tpu_custom_call.1} parent=99 // pred_fallthru
            _
        $region100: #{tpu_custom_call.1} parent=63 // pred_fallthru
          _
        // Predicated region
        $region109: #{tpu_custom_call.1} parent=63 // pred_check
          %p1140 = pneg %p320
        $region110: #{tpu_custom_call.1} parent=63 // pred_check_branch
          %1142 = sbr.rel (%p1140) target = $region112
        $region111: #{tpu_custom_call.1} parent=63 // pred_region
          %s1144 = ssub.s32 128, 128
          %1145 = vsyncadd [#allocation7], %s1144
          %s1147 = sshll.u32 [#allocation16], 4
          %s1148 = int_to_ptr.vmem [resolvable:$true] %s1147
          %1150 = dma.vmem_to_hbm [thread:$0]  %s1148, 128, %s11, [#allocation7]
        $region112: #{tpu_custom_call.1} parent=63 // pred_fallthru
          _
        // Predicated region
        $region113: #{tpu_custom_call.1} parent=63 // pred_check
          %p1151 = pneg %p320
        $region114: #{tpu_custom_call.1} parent=63 // pred_check_branch
          %1153 = sbr.rel (%p1151) target = $region116
        $region115: #{tpu_custom_call.1} parent=63 // pred_region
          %1154 = dma.done [#allocation7], 128
        $region116: #{tpu_custom_call.1} parent=63 // pred_fallthru
          _
      $region64: #{tpu_custom_call.1} parent=5 // pred_fallthru
        _
      %p1155 = scmp.le.s32.totalorder 2, %s24
      // Predicated region
      $region117: #{tpu_custom_call.1} parent=5 // pred_check
        %p1156 = pneg %p1155
      $region118: #{tpu_custom_call.1} parent=5 // pred_check_branch
        %1158 = sbr.rel (%p1156) target = $region120
      $region119: #{tpu_custom_call.1} parent=5 // pred_region
        %s1159 = ssub.s32 %s24, 2
      $region120: #{tpu_custom_call.1} parent=5 // pred_fallthru
        _
    $region6: #{tpu_custom_call.1} parent=1 // loop_footer
      %s28 = sadd.s32 1, %s24
    $region7: #{tpu_custom_call.1} parent=1 // loop_footer_branch
      %23 = sbr.rel target = $region3
    $region8: #{tpu_custom_call.1} parent=1 // loop_exit
      _
    %1160 = vsyncpa [#allocation6], 1
    %s1161 = scalar_lea.sflag [#allocation6], 1
    %1162 = vsyncpa %s1161, 1
    %1163 = vsyncpa [#allocation9], 1
    %1164 = vsyncpa [#allocation12], 1
    %s1165 = scalar_lea.sflag [#allocation12], 1
    %1166 = vsyncpa %s1165, 1
    %1167 = vsyncpa [#allocation15], 1
    %1168 = vsyncpa [#allocation7], 1
    %s1169 = scalar_lea.sflag [#allocation7], 1
    %1170 = vsyncpa %s1169, 1

</llo_original>
